<compile_context>
chip_gen: v7x
topology: tpu7x:2x2x1
jax: 0.10.0
libtpu: 0.0.40
codegen_flags: <defaults>
</compile_context>

<pallas_src>
import jax
import jax.numpy as jnp
import numpy as np
from jax.experimental import pallas as pl
from jax.experimental.pallas import tpu as pltpu

# ---------------- configuration (small, consistent with the module) ----------------
B = 2          # batch
S = 8          # sequence length
D_MODEL = 32   # d_model
NHEAD = 4      # number of heads
HEAD_DIM = D_MODEL // NHEAD
DFF = 64       # dim_feedforward
LN_EPS = 1e-5
VEC_W = max(2 * D_MODEL, DFF)   # lane width of the packed bias/LN slab

# packed vec slab rows:
#  0: [bq*scale | bk]   1: [bv | bo]   2: b1   3: b2   4: [g1 | beta1]   5: [g2 | beta2]


# ---------------- Pallas kernel: full encoder layer, whole (B*S, D) problem in one shot --------------
def _encoder_layer_kernel(src_ref, pos_ref, wqk_ref, wv_ref, wo_ref, w1_ref, w2_ref,
                          vec_ref, out_ref):
    src = src_ref[...]                     # (B*S, D)
    qk_in = src + pos_ref[...]             # q = k = with_pos_embed(src, pos)

    # ----- fused Q|K projection (scale folded into the Q half of wqk / its bias) -----
    qk = jnp.dot(qk_in, wqk_ref[...], preferred_element_type=jnp.float32)
    qk = qk + vec_ref[0:1, 0:2 * D_MODEL]                          # (B*S, 2D)
    v = jnp.dot(src, wv_ref[...], preferred_element_type=jnp.float32)
    v = v + vec_ref[1:2, 0:D_MODEL]                                # (B*S, D)

    q3 = qk[:, 0:D_MODEL].reshape(B, S, D_MODEL)
    k3 = qk[:, D_MODEL:2 * D_MODEL].reshape(B, S, D_MODEL)
    v3 = v.reshape(B, S, D_MODEL)

    # ----- per-head attention, batched over B with 3-D contractions (no explicit .T) -----
    head_outs = []
    for h in range(NHEAD):
        lo = h * HEAD_DIM
        hi = lo + HEAD_DIM
        qh = q3[:, :, lo:hi]               # (B, S, hd), already scaled via weight folding
        kh = k3[:, :, lo:hi]
        vh = v3[:, :, lo:hi]
        s = jnp.einsum('bqd,bkd->bqk', qh, kh, preferred_element_type=jnp.float32)
        m = jnp.max(s, axis=-1, keepdims=True)
        e = jnp.exp(s - m)
        p = e * pl.reciprocal(jnp.sum(e, axis=-1, keepdims=True), approx=True)
        head_outs.append(jnp.einsum('bqk,bkd->bqd', p, vh,
                                    preferred_element_type=jnp.float32))
    attn = jnp.concatenate(head_outs, axis=-1).reshape(B * S, D_MODEL)

    # ----- output projection + residual + LayerNorm1 (dropout1 = identity in eval) -----
    attn = jnp.dot(attn, wo_ref[...], preferred_element_type=jnp.float32)
    attn = attn + vec_ref[1:2, D_MODEL:2 * D_MODEL]
    x = src + attn
    mu = jnp.mean(x, axis=-1, keepdims=True)
    xc = x - mu
    var = jnp.mean(xc * xc, axis=-1, keepdims=True)
    x = xc * jax.lax.rsqrt(var + LN_EPS) * vec_ref[4:5, 0:D_MODEL] \
        + vec_ref[4:5, D_MODEL:2 * D_MODEL]

    # ----- feed-forward + residual + LayerNorm2 (dropout / dropout2 = identity in eval) -----
    h1 = jnp.dot(x, w1_ref[...], preferred_element_type=jnp.float32) + vec_ref[2:3, 0:DFF]
    h1 = jnp.maximum(h1, 0.0)              # relu
    h2 = jnp.dot(h1, w2_ref[...], preferred_element_type=jnp.float32) + vec_ref[3:4, 0:D_MODEL]
    y = x + h2
    mu2 = jnp.mean(y, axis=-1, keepdims=True)
    yc = y - mu2
    var2 = jnp.mean(yc * yc, axis=-1, keepdims=True)
    y = yc * jax.lax.rsqrt(var2 + LN_EPS) * vec_ref[5:6, 0:D_MODEL] \
        + vec_ref[5:6, D_MODEL:2 * D_MODEL]

    out_ref[...] = y.astype(out_ref.dtype)


# ---------------- wrapper: pack params, flatten batch, single kernel invocation ----------------
def _pack_params(params):
    scale = 1.0 / float(np.sqrt(HEAD_DIM))
    wqk = jnp.concatenate([params["wq"] * scale, params["wk"]], axis=1)   # (D, 2D)

    def row(*vs):
        v = jnp.concatenate([jnp.reshape(x, (-1,)) for x in vs])
        return jnp.pad(v, (0, VEC_W - v.shape[0]))

    vec = jnp.stack([
        row(params["bq"] * scale, params["bk"]),
        row(params["bv"], params["bo"]),
        row(params["b1"]),
        row(params["b2"]),
        row(params["g1"], params["be1"]),
        row(params["g2"], params["be2"]),
    ], axis=0)                                                            # (6, VEC_W)
    return wqk, params["wv"], params["wo"], params["w1"], params["w2"], vec


def transformer_encoder_layer(src, pos, params):
    """src, pos: (B, S, D). Returns (B, S, D)."""
    wqk, wv, wo, w1, w2, vec = _pack_params(params)
    src2 = src.reshape(B * S, D_MODEL)   # free layout fold in the wrapper
    pos2 = pos.reshape(B * S, D_MODEL)
    vmem = pl.BlockSpec(memory_space=pltpu.MemorySpace.VMEM)
    out = pl.pallas_call(
        _encoder_layer_kernel,
        out_shape=jax.ShapeDtypeStruct((B * S, D_MODEL), src.dtype),
        in_specs=[vmem] * 8,
        out_specs=vmem,
    )(src2, pos2, wqk, wv, wo, w1, w2, vec)
    return out.reshape(B, S, D_MODEL)


# ---------------- pure-JAX reference (mirrors nn.MultiheadAttention + post-norm layer) ----------------
def reference_layer(src, pos, p):
    qk_in = src + pos
    q = qk_in @ p["wq"] + p["bq"]
    k = qk_in @ p["wk"] + p["bk"]
    v = src @ p["wv"] + p["bv"]
    q = q.reshape(B, S, NHEAD, HEAD_DIM).transpose(0, 2, 1, 3)
    k = k.reshape(B, S, NHEAD, HEAD_DIM).transpose(0, 2, 1, 3)
    v = v.reshape(B, S, NHEAD, HEAD_DIM).transpose(0, 2, 1, 3)
    scores = jnp.einsum("bhqd,bhkd->bhqk", q, k) / jnp.sqrt(jnp.float32(HEAD_DIM))
    probs = jax.nn.softmax(scores, axis=-1)
    attn = jnp.einsum("bhqk,bhkd->bhqd", probs, v)
    attn = attn.transpose(0, 2, 1, 3).reshape(B, S, D_MODEL)
    attn = attn @ p["wo"] + p["bo"]

    def ln(x, g, b):
        mu = x.mean(-1, keepdims=True)
        var = ((x - mu) ** 2).mean(-1, keepdims=True)
        return (x - mu) / jnp.sqrt(var + LN_EPS) * g + b

    x = ln(src + attn, p["g1"], p["be1"])
    h = jnp.maximum(x @ p["w1"] + p["b1"], 0.0)
    h = h @ p["w2"] + p["b2"]
    return ln(x + h, p["g2"], p["be2"])


# ---------------- deterministic parameter init (weights pre-transposed so x @ W) ----------------
def init_params(key):
    ks = jax.random.split(key, 12)
    scale = 0.05
    return {
        "wq": scale * jax.random.normal(ks[0], (D_MODEL, D_MODEL), jnp.float32),
        "wk": scale * jax.random.normal(ks[1], (D_MODEL, D_MODEL), jnp.float32),
        "wv": scale * jax.random.normal(ks[2], (D_MODEL, D_MODEL), jnp.float32),
        "wo": scale * jax.random.normal(ks[3], (D_MODEL, D_MODEL), jnp.float32),
        "w1": scale * jax.random.normal(ks[4], (D_MODEL, DFF), jnp.float32),
        "w2": scale * jax.random.normal(ks[5], (DFF, D_MODEL), jnp.float32),
        "bq": 0.01 * jax.random.normal(ks[6], (D_MODEL,), jnp.float32),
        "bk": 0.01 * jax.random.normal(ks[7], (D_MODEL,), jnp.float32),
        "bv": 0.01 * jax.random.normal(ks[8], (D_MODEL,), jnp.float32),
        "bo": 0.01 * jax.random.normal(ks[9], (D_MODEL,), jnp.float32),
        "b1": 0.01 * jax.random.normal(ks[10], (DFF,), jnp.float32),
        "b2": 0.01 * jax.random.normal(ks[11], (D_MODEL,), jnp.float32),
        "g1": jnp.ones((D_MODEL,), jnp.float32),
        "be1": jnp.zeros((D_MODEL,), jnp.float32),
        "g2": jnp.ones((D_MODEL,), jnp.float32),
        "be2": jnp.zeros((D_MODEL,), jnp.float32),
    }


if __name__ == "__main__":
    key = jax.random.PRNGKey(0)
    k_src, k_pos, k_par = jax.random.split(key, 3)
    src = jax.random.normal(k_src, (B, S, D_MODEL), jnp.float32)
    pos = jax.random.normal(k_pos, (B, S, D_MODEL), jnp.float32)
    params = init_params(k_par)

    out = transformer_encoder_layer(src, pos, params)
    out = jax.block_until_ready(out)

    ref = reference_layer(src, pos, params)
    # tolerance relaxed to 5e-3 because the kernel uses the EUP approximate reciprocal
    # for the softmax denominator (pl.reciprocal(..., approx=True)).
    np.testing.assert_allclose(np.asarray(out), np.asarray(ref), rtol=5e-3, atol=5e-3)

    print("KERNEL_OK")
</pallas_src>

<mosaic_0001>
module attributes {stable_mosaic.version = 11 : i64} {
  func.func @_encoder_layer_kernel(%arg0: memref<16x32xf32, #tpu.memory_space<vmem>>, %arg1: memref<16x32xf32, #tpu.memory_space<vmem>>, %arg2: memref<32x64xf32, #tpu.memory_space<vmem>>, %arg3: memref<32x32xf32, #tpu.memory_space<vmem>>, %arg4: memref<32x32xf32, #tpu.memory_space<vmem>>, %arg5: memref<32x64xf32, #tpu.memory_space<vmem>>, %arg6: memref<64x32xf32, #tpu.memory_space<vmem>>, %arg7: memref<6x64xf32, #tpu.memory_space<vmem>>, %arg8: memref<16x32xf32, #tpu.memory_space<vmem>>) attributes {dimension_semantics = [], scalar_prefetch = 0 : i64, scratch_operands = 0 : i64, tpu.core_type = #tpu.core_type<tc>} {
    %c0 = arith.constant 0 : index
    %c0_0 = arith.constant 0 : index
    %0 = vector.load %arg0[%c0, %c0_0] : memref<16x32xf32, #tpu.memory_space<vmem>>, vector<16x32xf32>
    %c0_1 = arith.constant 0 : index
    %c0_2 = arith.constant 0 : index
    %1 = vector.load %arg1[%c0_1, %c0_2] : memref<16x32xf32, #tpu.memory_space<vmem>>, vector<16x32xf32>
    %2 = arith.addf %0, %1 : vector<16x32xf32>
    %c0_3 = arith.constant 0 : index
    %c0_4 = arith.constant 0 : index
    %3 = vector.load %arg2[%c0_3, %c0_4] : memref<32x64xf32, #tpu.memory_space<vmem>>, vector<32x64xf32>
    %cst = arith.constant dense<0.000000e+00> : vector<16x64xf32>
    %4 = tpu.matmul %2, %3, %cst {dimension_numbers = #tpu.dot_dimension_numbers<[1], [0], [0], [1], [0, 0, 1, 1], [], []>} : vector<16x32xf32>, vector<32x64xf32>, vector<16x64xf32> -> vector<16x64xf32>
    %c0_5 = arith.constant 0 : index
    %c0_6 = arith.constant 0 : index
    %5 = vector.load %arg7[%c0_5, %c0_6] : memref<6x64xf32, #tpu.memory_space<vmem>>, vector<1x64xf32>
    %6 = vector.broadcast %5 : vector<1x64xf32> to vector<16x64xf32>
    %7 = arith.addf %4, %6 : vector<16x64xf32>
    %c0_7 = arith.constant 0 : index
    %c0_8 = arith.constant 0 : index
    %8 = vector.load %arg3[%c0_7, %c0_8] : memref<32x32xf32, #tpu.memory_space<vmem>>, vector<32x32xf32>
    %cst_9 = arith.constant dense<0.000000e+00> : vector<16x32xf32>
    %9 = tpu.matmul %0, %8, %cst_9 {dimension_numbers = #tpu.dot_dimension_numbers<[1], [0], [0], [1], [0, 0, 1, 1], [], []>} : vector<16x32xf32>, vector<32x32xf32>, vector<16x32xf32> -> vector<16x32xf32>
    %c1 = arith.constant 1 : index
    %c0_10 = arith.constant 0 : index
    %10 = vector.load %arg7[%c1, %c0_10] : memref<6x64xf32, #tpu.memory_space<vmem>>, vector<1x32xf32>
    %11 = vector.broadcast %10 : vector<1x32xf32> to vector<16x32xf32>
    %12 = arith.addf %9, %11 : vector<16x32xf32>
    %13 = vector.extract_strided_slice %7 {offsets = [0, 0], sizes = [16, 32], strides = [1, 1]} : vector<16x64xf32> to vector<16x32xf32>
    %14 = vector.shape_cast %13 : vector<16x32xf32> to vector<2x8x32xf32>
    %15 = vector.extract_strided_slice %7 {offsets = [0, 32], sizes = [16, 32], strides = [1, 1]} : vector<16x64xf32> to vector<16x32xf32>
    %16 = vector.shape_cast %15 : vector<16x32xf32> to vector<2x8x32xf32>
    %17 = vector.shape_cast %12 : vector<16x32xf32> to vector<2x8x32xf32>
    %18 = vector.extract_strided_slice %14 {offsets = [0, 0, 0], sizes = [2, 8, 8], strides = [1, 1, 1]} : vector<2x8x32xf32> to vector<2x8x8xf32>
    %19 = vector.extract_strided_slice %16 {offsets = [0, 0, 0], sizes = [2, 8, 8], strides = [1, 1, 1]} : vector<2x8x32xf32> to vector<2x8x8xf32>
    %20 = vector.extract_strided_slice %17 {offsets = [0, 0, 0], sizes = [2, 8, 8], strides = [1, 1, 1]} : vector<2x8x32xf32> to vector<2x8x8xf32>
    "tpu.trace_start"() <{level = 10 : i32, message = "bqd,bkd->bqk"}> : () -> ()
    %cst_11 = arith.constant dense<0.000000e+00> : vector<2x8x8xf32>
    %21 = tpu.matmul %18, %19, %cst_11 {dimension_numbers = #tpu.dot_dimension_numbers<[2], [2], [1], [1], [0, 0, 0, 1, 1, 1], [0], [0]>} : vector<2x8x8xf32>, vector<2x8x8xf32>, vector<2x8x8xf32> -> vector<2x8x8xf32>
    "tpu.trace_stop"() : () -> ()
    %cst_12 = arith.constant dense<0xFF800000> : vector<2x8xf32>
    %22 = vector.multi_reduction <maximumf>, %21, %cst_12 [2] : vector<2x8x8xf32> to vector<2x8xf32>
    %23 = vector.shape_cast %22 : vector<2x8xf32> to vector<2x8x1xf32>
    %24 = vector.broadcast %23 : vector<2x8x1xf32> to vector<2x8x8xf32>
    %25 = arith.subf %21, %24 : vector<2x8x8xf32>
    %26 = math.exp %25 : vector<2x8x8xf32>
    %cst_13 = arith.constant dense<0.000000e+00> : vector<2x8xf32>
    %27 = vector.multi_reduction <add>, %26, %cst_13 [2] : vector<2x8x8xf32> to vector<2x8xf32>
    %28 = vector.shape_cast %27 : vector<2x8xf32> to vector<2x8x1xf32>
    %29 = tpu.reciprocal %28 {approx = true} : vector<2x8x1xf32> -> vector<2x8x1xf32>
    %30 = vector.broadcast %29 : vector<2x8x1xf32> to vector<2x8x8xf32>
    %31 = arith.mulf %26, %30 : vector<2x8x8xf32>
    "tpu.trace_start"() <{level = 10 : i32, message = "bqk,bkd->bqd"}> : () -> ()
    %cst_14 = arith.constant dense<0.000000e+00> : vector<2x8x8xf32>
    %32 = tpu.matmul %31, %20, %cst_14 {dimension_numbers = #tpu.dot_dimension_numbers<[2], [1], [1], [2], [0, 0, 0, 1, 1, 2], [0], [0]>} : vector<2x8x8xf32>, vector<2x8x8xf32>, vector<2x8x8xf32> -> vector<2x8x8xf32>
    "tpu.trace_stop"() : () -> ()
    %33 = vector.extract_strided_slice %14 {offsets = [0, 0, 8], sizes = [2, 8, 8], strides = [1, 1, 1]} : vector<2x8x32xf32> to vector<2x8x8xf32>
    %34 = vector.extract_strided_slice %16 {offsets = [0, 0, 8], sizes = [2, 8, 8], strides = [1, 1, 1]} : vector<2x8x32xf32> to vector<2x8x8xf32>
    %35 = vector.extract_strided_slice %17 {offsets = [0, 0, 8], sizes = [2, 8, 8], strides = [1, 1, 1]} : vector<2x8x32xf32> to vector<2x8x8xf32>
    "tpu.trace_start"() <{level = 10 : i32, message = "bqd,bkd->bqk"}> : () -> ()
    %cst_15 = arith.constant dense<0.000000e+00> : vector<2x8x8xf32>
    %36 = tpu.matmul %33, %34, %cst_15 {dimension_numbers = #tpu.dot_dimension_numbers<[2], [2], [1], [1], [0, 0, 0, 1, 1, 1], [0], [0]>} : vector<2x8x8xf32>, vector<2x8x8xf32>, vector<2x8x8xf32> -> vector<2x8x8xf32>
    "tpu.trace_stop"() : () -> ()
    %cst_16 = arith.constant dense<0xFF800000> : vector<2x8xf32>
    %37 = vector.multi_reduction <maximumf>, %36, %cst_16 [2] : vector<2x8x8xf32> to vector<2x8xf32>
    %38 = vector.shape_cast %37 : vector<2x8xf32> to vector<2x8x1xf32>
    %39 = vector.broadcast %38 : vector<2x8x1xf32> to vector<2x8x8xf32>
    %40 = arith.subf %36, %39 : vector<2x8x8xf32>
    %41 = math.exp %40 : vector<2x8x8xf32>
    %cst_17 = arith.constant dense<0.000000e+00> : vector<2x8xf32>
    %42 = vector.multi_reduction <add>, %41, %cst_17 [2] : vector<2x8x8xf32> to vector<2x8xf32>
    %43 = vector.shape_cast %42 : vector<2x8xf32> to vector<2x8x1xf32>
    %44 = tpu.reciprocal %43 {approx = true} : vector<2x8x1xf32> -> vector<2x8x1xf32>
    %45 = vector.broadcast %44 : vector<2x8x1xf32> to vector<2x8x8xf32>
    %46 = arith.mulf %41, %45 : vector<2x8x8xf32>
    "tpu.trace_start"() <{level = 10 : i32, message = "bqk,bkd->bqd"}> : () -> ()
    %cst_18 = arith.constant dense<0.000000e+00> : vector<2x8x8xf32>
    %47 = tpu.matmul %46, %35, %cst_18 {dimension_numbers = #tpu.dot_dimension_numbers<[2], [1], [1], [2], [0, 0, 0, 1, 1, 2], [0], [0]>} : vector<2x8x8xf32>, vector<2x8x8xf32>, vector<2x8x8xf32> -> vector<2x8x8xf32>
    "tpu.trace_stop"() : () -> ()
    %48 = vector.extract_strided_slice %14 {offsets = [0, 0, 16], sizes = [2, 8, 8], strides = [1, 1, 1]} : vector<2x8x32xf32> to vector<2x8x8xf32>
    %49 = vector.extract_strided_slice %16 {offsets = [0, 0, 16], sizes = [2, 8, 8], strides = [1, 1, 1]} : vector<2x8x32xf32> to vector<2x8x8xf32>
    %50 = vector.extract_strided_slice %17 {offsets = [0, 0, 16], sizes = [2, 8, 8], strides = [1, 1, 1]} : vector<2x8x32xf32> to vector<2x8x8xf32>
    "tpu.trace_start"() <{level = 10 : i32, message = "bqd,bkd->bqk"}> : () -> ()
    %cst_19 = arith.constant dense<0.000000e+00> : vector<2x8x8xf32>
    %51 = tpu.matmul %48, %49, %cst_19 {dimension_numbers = #tpu.dot_dimension_numbers<[2], [2], [1], [1], [0, 0, 0, 1, 1, 1], [0], [0]>} : vector<2x8x8xf32>, vector<2x8x8xf32>, vector<2x8x8xf32> -> vector<2x8x8xf32>
    "tpu.trace_stop"() : () -> ()
    %cst_20 = arith.constant dense<0xFF800000> : vector<2x8xf32>
    %52 = vector.multi_reduction <maximumf>, %51, %cst_20 [2] : vector<2x8x8xf32> to vector<2x8xf32>
    %53 = vector.shape_cast %52 : vector<2x8xf32> to vector<2x8x1xf32>
    %54 = vector.broadcast %53 : vector<2x8x1xf32> to vector<2x8x8xf32>
    %55 = arith.subf %51, %54 : vector<2x8x8xf32>
    %56 = math.exp %55 : vector<2x8x8xf32>
    %cst_21 = arith.constant dense<0.000000e+00> : vector<2x8xf32>
    %57 = vector.multi_reduction <add>, %56, %cst_21 [2] : vector<2x8x8xf32> to vector<2x8xf32>
    %58 = vector.shape_cast %57 : vector<2x8xf32> to vector<2x8x1xf32>
    %59 = tpu.reciprocal %58 {approx = true} : vector<2x8x1xf32> -> vector<2x8x1xf32>
    %60 = vector.broadcast %59 : vector<2x8x1xf32> to vector<2x8x8xf32>
    %61 = arith.mulf %56, %60 : vector<2x8x8xf32>
    "tpu.trace_start"() <{level = 10 : i32, message = "bqk,bkd->bqd"}> : () -> ()
    %cst_22 = arith.constant dense<0.000000e+00> : vector<2x8x8xf32>
    %62 = tpu.matmul %61, %50, %cst_22 {dimension_numbers = #tpu.dot_dimension_numbers<[2], [1], [1], [2], [0, 0, 0, 1, 1, 2], [0], [0]>} : vector<2x8x8xf32>, vector<2x8x8xf32>, vector<2x8x8xf32> -> vector<2x8x8xf32>
    "tpu.trace_stop"() : () -> ()
    %63 = vector.extract_strided_slice %14 {offsets = [0, 0, 24], sizes = [2, 8, 8], strides = [1, 1, 1]} : vector<2x8x32xf32> to vector<2x8x8xf32>
    %64 = vector.extract_strided_slice %16 {offsets = [0, 0, 24], sizes = [2, 8, 8], strides = [1, 1, 1]} : vector<2x8x32xf32> to vector<2x8x8xf32>
    %65 = vector.extract_strided_slice %17 {offsets = [0, 0, 24], sizes = [2, 8, 8], strides = [1, 1, 1]} : vector<2x8x32xf32> to vector<2x8x8xf32>
    "tpu.trace_start"() <{level = 10 : i32, message = "bqd,bkd->bqk"}> : () -> ()
    %cst_23 = arith.constant dense<0.000000e+00> : vector<2x8x8xf32>
    %66 = tpu.matmul %63, %64, %cst_23 {dimension_numbers = #tpu.dot_dimension_numbers<[2], [2], [1], [1], [0, 0, 0, 1, 1, 1], [0], [0]>} : vector<2x8x8xf32>, vector<2x8x8xf32>, vector<2x8x8xf32> -> vector<2x8x8xf32>
    "tpu.trace_stop"() : () -> ()
    %cst_24 = arith.constant dense<0xFF800000> : vector<2x8xf32>
    %67 = vector.multi_reduction <maximumf>, %66, %cst_24 [2] : vector<2x8x8xf32> to vector<2x8xf32>
    %68 = vector.shape_cast %67 : vector<2x8xf32> to vector<2x8x1xf32>
    %69 = vector.broadcast %68 : vector<2x8x1xf32> to vector<2x8x8xf32>
    %70 = arith.subf %66, %69 : vector<2x8x8xf32>
    %71 = math.exp %70 : vector<2x8x8xf32>
    %cst_25 = arith.constant dense<0.000000e+00> : vector<2x8xf32>
    %72 = vector.multi_reduction <add>, %71, %cst_25 [2] : vector<2x8x8xf32> to vector<2x8xf32>
    %73 = vector.shape_cast %72 : vector<2x8xf32> to vector<2x8x1xf32>
    %74 = tpu.reciprocal %73 {approx = true} : vector<2x8x1xf32> -> vector<2x8x1xf32>
    %75 = vector.broadcast %74 : vector<2x8x1xf32> to vector<2x8x8xf32>
    %76 = arith.mulf %71, %75 : vector<2x8x8xf32>
    "tpu.trace_start"() <{level = 10 : i32, message = "bqk,bkd->bqd"}> : () -> ()
    %cst_26 = arith.constant dense<0.000000e+00> : vector<2x8x8xf32>
    %77 = tpu.matmul %76, %65, %cst_26 {dimension_numbers = #tpu.dot_dimension_numbers<[2], [1], [1], [2], [0, 0, 0, 1, 1, 2], [0], [0]>} : vector<2x8x8xf32>, vector<2x8x8xf32>, vector<2x8x8xf32> -> vector<2x8x8xf32>
    "tpu.trace_stop"() : () -> ()
    %78 = tpu.concatenate %32, %47, %62, %77 in 2 : vector<2x8x8xf32>, vector<2x8x8xf32>, vector<2x8x8xf32>, vector<2x8x8xf32> -> vector<2x8x32xf32>
    %79 = vector.shape_cast %78 : vector<2x8x32xf32> to vector<16x32xf32>
    %c0_27 = arith.constant 0 : index
    %c0_28 = arith.constant 0 : index
    %80 = vector.load %arg4[%c0_27, %c0_28] : memref<32x32xf32, #tpu.memory_space<vmem>>, vector<32x32xf32>
    %cst_29 = arith.constant dense<0.000000e+00> : vector<16x32xf32>
    %81 = tpu.matmul %79, %80, %cst_29 {dimension_numbers = #tpu.dot_dimension_numbers<[1], [0], [0], [1], [0, 0, 1, 1], [], []>} : vector<16x32xf32>, vector<32x32xf32>, vector<16x32xf32> -> vector<16x32xf32>
    %c1_30 = arith.constant 1 : index
    %c32 = arith.constant 32 : index
    %82 = vector.load %arg7[%c1_30, %c32] : memref<6x64xf32, #tpu.memory_space<vmem>>, vector<1x32xf32>
    %83 = vector.broadcast %82 : vector<1x32xf32> to vector<16x32xf32>
    %84 = arith.addf %81, %83 : vector<16x32xf32>
    %85 = arith.addf %0, %84 : vector<16x32xf32>
    %cst_31 = arith.constant dense<0.000000e+00> : vector<16xf32>
    %86 = vector.multi_reduction <add>, %85, %cst_31 [1] : vector<16x32xf32> to vector<16xf32>
    %87 = vector.shape_cast %86 : vector<16xf32> to vector<16x1xf32>
    %cst_32 = arith.constant 3.200000e+01 : f32
    %88 = vector.broadcast %cst_32 : f32 to vector<16x1xf32>
    %89 = arith.divf %87, %88 : vector<16x1xf32>
    %90 = vector.broadcast %89 : vector<16x1xf32> to vector<16x32xf32>
    %91 = arith.subf %85, %90 : vector<16x32xf32>
    %92 = arith.mulf %91, %91 : vector<16x32xf32>
    %cst_33 = arith.constant dense<0.000000e+00> : vector<16xf32>
    %93 = vector.multi_reduction <add>, %92, %cst_33 [1] : vector<16x32xf32> to vector<16xf32>
    %94 = vector.shape_cast %93 : vector<16xf32> to vector<16x1xf32>
    %cst_34 = arith.constant 3.200000e+01 : f32
    %95 = vector.broadcast %cst_34 : f32 to vector<16x1xf32>
    %96 = arith.divf %94, %95 : vector<16x1xf32>
    %cst_35 = arith.constant 9.99999974E-6 : f32
    %97 = vector.broadcast %cst_35 : f32 to vector<16x1xf32>
    %98 = arith.addf %96, %97 : vector<16x1xf32>
    %99 = math.rsqrt %98 : vector<16x1xf32>
    %100 = vector.broadcast %99 : vector<16x1xf32> to vector<16x32xf32>
    %101 = arith.mulf %91, %100 : vector<16x32xf32>
    %c4 = arith.constant 4 : index
    %c0_36 = arith.constant 0 : index
    %102 = vector.load %arg7[%c4, %c0_36] : memref<6x64xf32, #tpu.memory_space<vmem>>, vector<1x32xf32>
    %103 = vector.broadcast %102 : vector<1x32xf32> to vector<16x32xf32>
    %104 = arith.mulf %101, %103 : vector<16x32xf32>
    %c4_37 = arith.constant 4 : index
    %c32_38 = arith.constant 32 : index
    %105 = vector.load %arg7[%c4_37, %c32_38] : memref<6x64xf32, #tpu.memory_space<vmem>>, vector<1x32xf32>
    %106 = vector.broadcast %105 : vector<1x32xf32> to vector<16x32xf32>
    %107 = arith.addf %104, %106 : vector<16x32xf32>
    %c0_39 = arith.constant 0 : index
    %c0_40 = arith.constant 0 : index
    %108 = vector.load %arg5[%c0_39, %c0_40] : memref<32x64xf32, #tpu.memory_space<vmem>>, vector<32x64xf32>
    %cst_41 = arith.constant dense<0.000000e+00> : vector<16x64xf32>
    %109 = tpu.matmul %107, %108, %cst_41 {dimension_numbers = #tpu.dot_dimension_numbers<[1], [0], [0], [1], [0, 0, 1, 1], [], []>} : vector<16x32xf32>, vector<32x64xf32>, vector<16x64xf32> -> vector<16x64xf32>
    %c2 = arith.constant 2 : index
    %c0_42 = arith.constant 0 : index
    %110 = vector.load %arg7[%c2, %c0_42] : memref<6x64xf32, #tpu.memory_space<vmem>>, vector<1x64xf32>
    %111 = vector.broadcast %110 : vector<1x64xf32> to vector<16x64xf32>
    %112 = arith.addf %109, %111 : vector<16x64xf32>
    %cst_43 = arith.constant 0.000000e+00 : f32
    %113 = vector.broadcast %cst_43 : f32 to vector<16x64xf32>
    %114 = arith.maximumf %112, %113 : vector<16x64xf32>
    %c0_44 = arith.constant 0 : index
    %c0_45 = arith.constant 0 : index
    %115 = vector.load %arg6[%c0_44, %c0_45] : memref<64x32xf32, #tpu.memory_space<vmem>>, vector<64x32xf32>
    %cst_46 = arith.constant dense<0.000000e+00> : vector<16x32xf32>
    %116 = tpu.matmul %114, %115, %cst_46 {dimension_numbers = #tpu.dot_dimension_numbers<[1], [0], [0], [1], [0, 0, 1, 1], [], []>} : vector<16x64xf32>, vector<64x32xf32>, vector<16x32xf32> -> vector<16x32xf32>
    %c3 = arith.constant 3 : index
    %c0_47 = arith.constant 0 : index
    %117 = vector.load %arg7[%c3, %c0_47] : memref<6x64xf32, #tpu.memory_space<vmem>>, vector<1x32xf32>
    %118 = vector.broadcast %117 : vector<1x32xf32> to vector<16x32xf32>
    %119 = arith.addf %116, %118 : vector<16x32xf32>
    %120 = arith.addf %107, %119 : vector<16x32xf32>
    %cst_48 = arith.constant dense<0.000000e+00> : vector<16xf32>
    %121 = vector.multi_reduction <add>, %120, %cst_48 [1] : vector<16x32xf32> to vector<16xf32>
    %122 = vector.shape_cast %121 : vector<16xf32> to vector<16x1xf32>
    %cst_49 = arith.constant 3.200000e+01 : f32
    %123 = vector.broadcast %cst_49 : f32 to vector<16x1xf32>
    %124 = arith.divf %122, %123 : vector<16x1xf32>
    %125 = vector.broadcast %124 : vector<16x1xf32> to vector<16x32xf32>
    %126 = arith.subf %120, %125 : vector<16x32xf32>
    %127 = arith.mulf %126, %126 : vector<16x32xf32>
    %cst_50 = arith.constant dense<0.000000e+00> : vector<16xf32>
    %128 = vector.multi_reduction <add>, %127, %cst_50 [1] : vector<16x32xf32> to vector<16xf32>
    %129 = vector.shape_cast %128 : vector<16xf32> to vector<16x1xf32>
    %cst_51 = arith.constant 3.200000e+01 : f32
    %130 = vector.broadcast %cst_51 : f32 to vector<16x1xf32>
    %131 = arith.divf %129, %130 : vector<16x1xf32>
    %cst_52 = arith.constant 9.99999974E-6 : f32
    %132 = vector.broadcast %cst_52 : f32 to vector<16x1xf32>
    %133 = arith.addf %131, %132 : vector<16x1xf32>
    %134 = math.rsqrt %133 : vector<16x1xf32>
    %135 = vector.broadcast %134 : vector<16x1xf32> to vector<16x32xf32>
    %136 = arith.mulf %126, %135 : vector<16x32xf32>
    %c5 = arith.constant 5 : index
    %c0_53 = arith.constant 0 : index
    %137 = vector.load %arg7[%c5, %c0_53] : memref<6x64xf32, #tpu.memory_space<vmem>>, vector<1x32xf32>
    %138 = vector.broadcast %137 : vector<1x32xf32> to vector<16x32xf32>
    %139 = arith.mulf %136, %138 : vector<16x32xf32>
    %c5_54 = arith.constant 5 : index
    %c32_55 = arith.constant 32 : index
    %140 = vector.load %arg7[%c5_54, %c32_55] : memref<6x64xf32, #tpu.memory_space<vmem>>, vector<1x32xf32>
    %141 = vector.broadcast %140 : vector<1x32xf32> to vector<16x32xf32>
    %142 = arith.addf %139, %141 : vector<16x32xf32>
    %c0_56 = arith.constant 0 : index
    %c0_57 = arith.constant 0 : index
    %143 = vector.load %arg8[%c0_56, %c0_57] : memref<16x32xf32, #tpu.memory_space<vmem>>, vector<16x32xf32>
    tpu.vector_store %arg8[%c0_56, %c0_57], %142 {strides = array<i32>} : memref<16x32xf32, #tpu.memory_space<vmem>>, vector<16x32xf32>,
    return
  }
}

</mosaic_0001>

<llo_original>
// kernel: tpu_custom_call.1
$region0: #{tpu_custom_call.1}
  #allocation0 [shape = 'u32[]', space=smem, size = 0x4, offset = 0x4, fixed_abs, tag = 'smem constant byte address 0x4 - core index']
  #allocation1 [shape = 'u32[144,128]{1,0:T(1,128)}', space=vmem, size = 0x12000, scoped, tag = 'internal scratch']
  %s0 = inlined_call_operand.hbm [shape: f32[16,32], index: 0, kind: input, shape index: {}]
  %s1 = inlined_call_operand.hbm [shape: f32[16,32], index: 1, kind: input, shape index: {}]
  %s2 = inlined_call_operand.vmem [shape: f32[32,64], index: 2, kind: input, shape index: {}]
  %s3 = inlined_call_operand.vmem [shape: f32[32,32], index: 3, kind: input, shape index: {}]
  %s4 = inlined_call_operand.vmem [shape: f32[32,32], index: 4, kind: input, shape index: {}]
  %s5 = inlined_call_operand.hbm [shape: f32[32,64], index: 5, kind: input, shape index: {}]
  %s6 = inlined_call_operand.vmem [shape: f32[64,32], index: 6, kind: input, shape index: {}]
  %s7 = inlined_call_operand.vmem [shape: f32[6,64], index: 7, kind: input, shape index: {}]
  %s8 = inlined_call_operand.hbm [shape: f32[16,32], index: 8, kind: output, shape index: {}]
  %s9 = sld [smem:[#allocation0]]
  $region54: #{tpu_custom_call.1} parent=0
    _
  %s11 = ssub.s32 1, %s9
  %s12 = scalar_select 0, %s11, %s9
  $region1: #{tpu_custom_call.1} parent=0
    #allocation2 [shape = 'u8[8192]{0}', space=vmem, size = 0x2000, scoped, tag = 'input window, operand 0, single buffered']
    #allocation3 [shape = 's32[1]{0}', space=sflag, size = 0x4, scoped, tag = 'scoped memory for tpu_custom_call.1']
    #allocation4 [shape = 's32[1]{0}', space=sflag, size = 0x4, scoped, tag = 'scoped memory for tpu_custom_call.1']
    #allocation5 [shape = 'u8[8192]{0}', space=vmem, size = 0x2000, scoped, tag = 'input window, operand 1, single buffered']
    #allocation6 [shape = 's32[1]{0}', space=sflag, size = 0x4, scoped, tag = 'scoped memory for tpu_custom_call.1']
    #allocation7 [shape = 'u8[16384]{0}', space=vmem, size = 0x4000, scoped, tag = 'input window, operand 5, single buffered']
    #allocation8 [shape = 'u8[8192]{0}', space=vmem, size = 0x2000, scoped, tag = 'output window, operand 0, single buffered']
    %13 = vsyncpa [#allocation3], 0
    %14 = vsyncpa [#allocation6], 0
    %15 = vsyncpa [#allocation4], 0
    // Predicated region
    $region2: #{tpu_custom_call.1} parent=1 // pred_check
      _
    $region3: #{tpu_custom_call.1} parent=1 // pred_check_branch
      %17 = sbr.rel (0) target = $region5
    $region4: #{tpu_custom_call.1} parent=1 // pred_region
      %s19 = ssub.s32 256, 256
      %20 = vsyncadd [#allocation3], %s19
      %s21 = sshll.u32 [#allocation2], 4
      %s22 = int_to_ptr.vmem [resolvable:$true] %s21
      %27 = dma.hbm_to_vmem [thread:$0]  %s0, 256, %s22, [#allocation3], 128, 128, 8
    $region5: #{tpu_custom_call.1} parent=1 // pred_fallthru
      _
    // Predicated region
    $region6: #{tpu_custom_call.1} parent=1 // pred_check
      _
    $region7: #{tpu_custom_call.1} parent=1 // pred_check_branch
      %29 = sbr.rel (0) target = $region9
    $region8: #{tpu_custom_call.1} parent=1 // pred_region
      %s31 = ssub.s32 256, 256
      %32 = vsyncadd [#allocation6], %s31
      %s33 = sshll.u32 [#allocation5], 4
      %s34 = int_to_ptr.vmem [resolvable:$true] %s33
      %39 = dma.hbm_to_vmem [thread:$0]  %s1, 256, %s34, [#allocation6], 128, 128, 8
    $region9: #{tpu_custom_call.1} parent=1 // pred_fallthru
      _
    // Predicated region
    $region10: #{tpu_custom_call.1} parent=1 // pred_check
      _
    $region11: #{tpu_custom_call.1} parent=1 // pred_check_branch
      %41 = sbr.rel (0) target = $region13
    $region12: #{tpu_custom_call.1} parent=1 // pred_region
      _
    $region13: #{tpu_custom_call.1} parent=1 // pred_fallthru
      _
    // Predicated region
    $region14: #{tpu_custom_call.1} parent=1 // pred_check
      _
    $region15: #{tpu_custom_call.1} parent=1 // pred_check_branch
      %43 = sbr.rel (0) target = $region17
    $region16: #{tpu_custom_call.1} parent=1 // pred_region
      _
    $region17: #{tpu_custom_call.1} parent=1 // pred_fallthru
      _
    // Predicated region
    $region18: #{tpu_custom_call.1} parent=1 // pred_check
      _
    $region19: #{tpu_custom_call.1} parent=1 // pred_check_branch
      %45 = sbr.rel (0) target = $region21
    $region20: #{tpu_custom_call.1} parent=1 // pred_region
      _
    $region21: #{tpu_custom_call.1} parent=1 // pred_fallthru
      _
    // Predicated region
    $region22: #{tpu_custom_call.1} parent=1 // pred_check
      _
    $region23: #{tpu_custom_call.1} parent=1 // pred_check_branch
      %47 = sbr.rel (0) target = $region25
    $region24: #{tpu_custom_call.1} parent=1 // pred_region
      %s49 = ssub.s32 512, 512
      %50 = vsyncadd [#allocation6], %s49
      %s51 = sshll.u32 [#allocation7], 4
      %s52 = int_to_ptr.vmem [resolvable:$true] %s51
      %57 = dma.hbm_to_vmem [thread:$0]  %s5, 512, %s52, [#allocation6], 128, 128, 8
    $region25: #{tpu_custom_call.1} parent=1 // pred_fallthru
      _
    // Predicated region
    $region26: #{tpu_custom_call.1} parent=1 // pred_check
      _
    $region27: #{tpu_custom_call.1} parent=1 // pred_check_branch
      %59 = sbr.rel (0) target = $region29
    $region28: #{tpu_custom_call.1} parent=1 // pred_region
      _
    $region29: #{tpu_custom_call.1} parent=1 // pred_fallthru
      _
    // Predicated region
    $region30: #{tpu_custom_call.1} parent=1 // pred_check
      _
    $region31: #{tpu_custom_call.1} parent=1 // pred_check_branch
      %61 = sbr.rel (0) target = $region33
    $region32: #{tpu_custom_call.1} parent=1 // pred_region
      _
    $region33: #{tpu_custom_call.1} parent=1 // pred_fallthru
      _
    // Predicated region
    $region34: #{tpu_custom_call.1} parent=1 // pred_check
      _
    $region35: #{tpu_custom_call.1} parent=1 // pred_check_branch
      %63 = sbr.rel (0) target = $region37
    $region36: #{tpu_custom_call.1} parent=1 // pred_region
      %64 = dma.done [#allocation3], 256
    $region37: #{tpu_custom_call.1} parent=1 // pred_fallthru
      _
    // Predicated region
    $region38: #{tpu_custom_call.1} parent=1 // pred_check
      _
    $region39: #{tpu_custom_call.1} parent=1 // pred_check_branch
      %66 = sbr.rel (0) target = $region41
    $region40: #{tpu_custom_call.1} parent=1 // pred_region
      %67 = dma.done [#allocation6], 256
    $region41: #{tpu_custom_call.1} parent=1 // pred_fallthru
      _
    // Predicated region
    $region42: #{tpu_custom_call.1} parent=1 // pred_check
      _
    $region43: #{tpu_custom_call.1} parent=1 // pred_check_branch
      %69 = sbr.rel (0) target = $region45
    $region44: #{tpu_custom_call.1} parent=1 // pred_region
      %70 = dma.done [#allocation6], 512
    $region45: #{tpu_custom_call.1} parent=1 // pred_fallthru
      _
    %v71 = vld [vmem:[#allocation2] sm:$0xff]
    %v72 = vld [vmem:[#allocation2 + $0x8] sm:$0xff]
    %v73 = vld [vmem:[#allocation5] sm:$0xff]
    %v74 = vld [vmem:[#allocation5 + $0x8] sm:$0xff]
    %v75 = vadd.f32 %v71, %v73
    %v76 = vadd.f32 %v72, %v74
    %v77 = vld [vmem:[%s2] sm:$0xff]
    %v78 = vld [vmem:[%s2 + $0x8] sm:$0xff]
    %v79 = vld [vmem:[%s2 + $0x10] sm:$0xff]
    %v80 = vld [vmem:[%s2 + $0x18] sm:$0xff]
    %v81 = vld [vmem:[%s7] sm:$0x1]
    %v82 = vlaneseq
    %v83 = vshrl.u32 %v82, 7
    %v84 = vsub.s32 0, %v83
    %v85 = vrot.slane %v81, %v84
    %vm86 = vcmask 261120
    %v88 = vsel %vm86, %v75, 0
    %v91 = vsel %vm86, %v76, 0
    %93 = vmatprep.subr.mxu0 0.0
    %94 = vmatpush1.msra.mxu0 %v77
    %95 = vmatprep.subr.mxu0 0.0
    %96 = vmatpush1.msra.mxu0 %v78
    %97 = vmatprep.subr.mxu0 0.0
    %98 = vmatpush1.msra.mxu0 %v79
    %99 = vmatprep.subr.mxu0 0.0
    %100 = vmatpush1.msra.mxu0 %v80
    %101 = vmatprep.subr.mxu0 0.0
    %102 = vmatpush1.msra.mxu0 0.0
    %103 = vmatprep.subr.mxu0 0.0
    %104 = vmatpush1.msra.mxu0 0.0
    %105 = vmatprep.subr.mxu0 0.0
    %106 = vmatpush1.msra.mxu0 0.0
    %107 = vmatprep.subr.mxu0 0.0
    %108 = vmatpush1.msra.mxu0 0.0
    %109 = vmatprep.subr.mxu0 0.0
    %110 = vmatpush1.msra.mxu0 0.0
    %111 = vmatprep.subr.mxu0 0.0
    %112 = vmatpush1.msra.mxu0 0.0
    %113 = vmatprep.subr.mxu0 0.0
    %114 = vmatpush1.msra.mxu0 0.0
    %115 = vmatprep.subr.mxu0 0.0
    %116 = vmatpush1.msra.mxu0 0.0
    %117 = vmatprep.subr.mxu0 0.0
    %118 = vmatpush1.msra.mxu0 0.0
    %119 = vmatprep.subr.mxu0 0.0
    %120 = vmatpush1.msra.mxu0 0.0
    %121 = vmatprep.subr.mxu0 0.0
    %122 = vmatpush1.msra.mxu0 0.0
    %123 = vmatprep.subr.mxu0 0.0
    %124 = vmatpush1.msra.mxu0 0.0
    %125 = vmatprep.subr.mxu0 0.0
    %126 = vmatpush1.msra.mxu0 0.0
    %127 = vmatprep.subr.mxu0 0.0
    %128 = vmatpush1.msra.mxu0 0.0
    %129 = vmatprep.subr.mxu0 0.0
    %130 = vmatpush1.msra.mxu0 0.0
    %131 = vmatprep.subr.mxu0 0.0
    %132 = vmatpush1.msra.mxu0 0.0
    %133 = vmatprep.subr.mxu0 0.0
    %134 = vmatpush1.msra.mxu0 0.0
    %135 = vmatprep.subr.mxu0 0.0
    %136 = vmatpush1.msra.mxu0 0.0
    %137 = vmatprep.subr.mxu0 0.0
    %138 = vmatpush1.msra.mxu0 0.0
    %139 = vmatprep.subr.mxu0 0.0
    %140 = vmatpush1.msra.mxu0 0.0
    %141 = vmatprep.subr.mxu0 0.0
    %142 = vmatpush1.msra.mxu0 0.0
    %143 = vmatprep.subr.mxu0 0.0
    %144 = vmatpush1.msra.mxu0 0.0
    %145 = vmatprep.subr.mxu0 0.0
    %146 = vmatpush1.msra.mxu0 0.0
    %147 = vmatprep.subr.mxu0 0.0
    %148 = vmatpush1.msra.mxu0 0.0
    %149 = vmatprep.subr.mxu0 0.0
    %150 = vmatpush1.msra.mxu0 0.0
    %151 = vmatprep.subr.mxu0 0.0
    %152 = vmatpush1.msra.mxu0 0.0
    %153 = vmatprep.subr.mxu0 0.0
    %154 = vmatpush1.msra.mxu0 0.0
    %155 = vmatprep.subr.mxu0 0.0
    %156 = vmatpush1.msra.mxu0 0.0
    %157 = vmatprep.mubr.f32.mxu0 0.0
    %158 = vmatmul.mubr.f32.gmra.mrb[0].mxu0 %v88
    %v159 = vpop.f32.mrb[0].mxu0
    %v160 = vadd.f32 %v85, %v159
    %v161 = vpop.f32.mrb[0].mxu0
    %162 = vmatprep.mubr.f32.mxu0 0.0
    %163 = vmatmul.mubr.f32.gmra.mrb[0].mxu0 %v91
    %v164 = vpop.f32.mrb[0].mxu0
    %v165 = vadd.f32 %v85, %v164
    %v166 = vpop.f32.mrb[0].mxu0
    %167 = vdwg.mxu0
    %v168 = vld [vmem:[%s3] sm:$0xff]
    %v169 = vld [vmem:[%s3 + $0x8] sm:$0xff]
    %v170 = vld [vmem:[%s3 + $0x10] sm:$0xff]
    %v171 = vld [vmem:[%s3 + $0x18] sm:$0xff]
    %v172 = vld [vmem:[%s7 + $0x1] sm:$0x1]
    %v173 = vlaneseq
    %v174 = vshrl.u32 %v173, 7
    %v175 = vsub.s32 0, %v174
    %v176 = vrot.slane %v172, %v175
    %v178 = vsel %vm86, %v71, 0
    %v181 = vsel %vm86, %v72, 0
    %183 = vmatprep.subr.mxu0 0.0
    %184 = vmatpush1.msra.mxu0 %v168
    %185 = vmatprep.subr.mxu0 0.0
    %186 = vmatpush1.msra.mxu0 %v169
    %187 = vmatprep.subr.mxu0 0.0
    %188 = vmatpush1.msra.mxu0 %v170
    %189 = vmatprep.subr.mxu0 0.0
    %190 = vmatpush1.msra.mxu0 %v171
    %191 = vmatprep.subr.mxu0 0.0
    %192 = vmatpush1.msra.mxu0 0.0
    %193 = vmatprep.subr.mxu0 0.0
    %194 = vmatpush1.msra.mxu0 0.0
    %195 = vmatprep.subr.mxu0 0.0
    %196 = vmatpush1.msra.mxu0 0.0
    %197 = vmatprep.subr.mxu0 0.0
    %198 = vmatpush1.msra.mxu0 0.0
    %199 = vmatprep.subr.mxu0 0.0
    %200 = vmatpush1.msra.mxu0 0.0
    %201 = vmatprep.subr.mxu0 0.0
    %202 = vmatpush1.msra.mxu0 0.0
    %203 = vmatprep.subr.mxu0 0.0
    %204 = vmatpush1.msra.mxu0 0.0
    %205 = vmatprep.subr.mxu0 0.0
    %206 = vmatpush1.msra.mxu0 0.0
    %207 = vmatprep.subr.mxu0 0.0
    %208 = vmatpush1.msra.mxu0 0.0
    %209 = vmatprep.subr.mxu0 0.0
    %210 = vmatpush1.msra.mxu0 0.0
    %211 = vmatprep.subr.mxu0 0.0
    %212 = vmatpush1.msra.mxu0 0.0
    %213 = vmatprep.subr.mxu0 0.0
    %214 = vmatpush1.msra.mxu0 0.0
    %215 = vmatprep.subr.mxu0 0.0
    %216 = vmatpush1.msra.mxu0 0.0
    %217 = vmatprep.subr.mxu0 0.0
    %218 = vmatpush1.msra.mxu0 0.0
    %219 = vmatprep.subr.mxu0 0.0
    %220 = vmatpush1.msra.mxu0 0.0
    %221 = vmatprep.subr.mxu0 0.0
    %222 = vmatpush1.msra.mxu0 0.0
    %223 = vmatprep.subr.mxu0 0.0
    %224 = vmatpush1.msra.mxu0 0.0
    %225 = vmatprep.subr.mxu0 0.0
    %226 = vmatpush1.msra.mxu0 0.0
    %227 = vmatprep.subr.mxu0 0.0
    %228 = vmatpush1.msra.mxu0 0.0
    %229 = vmatprep.subr.mxu0 0.0
    %230 = vmatpush1.msra.mxu0 0.0
    %231 = vmatprep.subr.mxu0 0.0
    %232 = vmatpush1.msra.mxu0 0.0
    %233 = vmatprep.subr.mxu0 0.0
    %234 = vmatpush1.msra.mxu0 0.0
    %235 = vmatprep.subr.mxu0 0.0
    %236 = vmatpush1.msra.mxu0 0.0
    %237 = vmatprep.subr.mxu0 0.0
    %238 = vmatpush1.msra.mxu0 0.0
    %239 = vmatprep.subr.mxu0 0.0
    %240 = vmatpush1.msra.mxu0 0.0
    %241 = vmatprep.subr.mxu0 0.0
    %242 = vmatpush1.msra.mxu0 0.0
    %243 = vmatprep.subr.mxu0 0.0
    %244 = vmatpush1.msra.mxu0 0.0
    %245 = vmatprep.subr.mxu0 0.0
    %246 = vmatpush1.msra.mxu0 0.0
    %247 = vmatprep.mubr.f32.mxu0 0.0
    %248 = vmatmul.mubr.f32.gmra.mrb[0].mxu0 %v178
    %v249 = vpop.f32.mrb[0].mxu0
    %v250 = vadd.f32 %v176, %v249
    %v251 = vpop.f32.mrb[0].mxu0
    %252 = vmatprep.mubr.f32.mxu0 0.0
    %253 = vmatmul.mubr.f32.gmra.mrb[0].mxu0 %v181
    %v254 = vpop.f32.mrb[0].mxu0
    %v255 = vadd.f32 %v176, %v254
    %v256 = vpop.f32.mrb[0].mxu0
    %257 = vdwg.mxu0
    %259 = vrot.lane.b32.xlu0 %v160, 96
    %v260 = vpop.permute.xlu0 %259
    %vm261 = vcmask 64512
    %v262 = vsel %vm261, %v160, 0
    %v264 = vsel %vm261, %v260, 0
    %266 = vmatprep.subr.mxu0 0.0
    %267 = vmatpush1.xpose.msra.mxu0 %v264
    %268 = vmatprep.subr.mxu0 0.0
    %269 = vmatpush1.xpose.msra.mxu0 0.0
    %270 = vmatprep.subr.mxu0 0.0
    %271 = vmatpush1.xpose.msra.mxu0 0.0
    %272 = vmatprep.subr.mxu0 0.0
    %273 = vmatpush1.xpose.msra.mxu0 0.0
    %274 = vmatprep.subr.mxu0 0.0
    %275 = vmatpush1.xpose.msra.mxu0 0.0
    %276 = vmatprep.subr.mxu0 0.0
    %277 = vmatpush1.xpose.msra.mxu0 0.0
    %278 = vmatprep.subr.mxu0 0.0
    %279 = vmatpush1.xpose.msra.mxu0 0.0
    %280 = vmatprep.subr.mxu0 0.0
    %281 = vmatpush1.xpose.msra.mxu0 0.0
    %282 = vmatprep.subr.mxu0 0.0
    %283 = vmatpush1.xpose.msra.mxu0 0.0
    %284 = vmatprep.subr.mxu0 0.0
    %285 = vmatpush1.xpose.msra.mxu0 0.0
    %286 = vmatprep.subr.mxu0 0.0
    %287 = vmatpush1.xpose.msra.mxu0 0.0
    %288 = vmatprep.subr.mxu0 0.0
    %289 = vmatpush1.xpose.msra.mxu0 0.0
    %290 = vmatprep.subr.mxu0 0.0
    %291 = vmatpush1.xpose.msra.mxu0 0.0
    %292 = vmatprep.subr.mxu0 0.0
    %293 = vmatpush1.xpose.msra.mxu0 0.0
    %294 = vmatprep.subr.mxu0 0.0
    %295 = vmatpush1.xpose.msra.mxu0 0.0
    %296 = vmatprep.subr.mxu0 0.0
    %297 = vmatpush1.xpose.msra.mxu0 0.0
    %298 = vmatprep.subr.mxu0 0.0
    %299 = vmatpush1.xpose.msra.mxu0 0.0
    %300 = vmatprep.subr.mxu0 0.0
    %301 = vmatpush1.xpose.msra.mxu0 0.0
    %302 = vmatprep.subr.mxu0 0.0
    %303 = vmatpush1.xpose.msra.mxu0 0.0
    %304 = vmatprep.subr.mxu0 0.0
    %305 = vmatpush1.xpose.msra.mxu0 0.0
    %306 = vmatprep.subr.mxu0 0.0
    %307 = vmatpush1.xpose.msra.mxu0 0.0
    %308 = vmatprep.subr.mxu0 0.0
    %309 = vmatpush1.xpose.msra.mxu0 0.0
    %310 = vmatprep.subr.mxu0 0.0
    %311 = vmatpush1.xpose.msra.mxu0 0.0
    %312 = vmatprep.subr.mxu0 0.0
    %313 = vmatpush1.xpose.msra.mxu0 0.0
    %314 = vmatprep.subr.mxu0 0.0
    %315 = vmatpush1.xpose.msra.mxu0 0.0
    %316 = vmatprep.subr.mxu0 0.0
    %317 = vmatpush1.xpose.msra.mxu0 0.0
    %318 = vmatprep.subr.mxu0 0.0
    %319 = vmatpush1.xpose.msra.mxu0 0.0
    %320 = vmatprep.subr.mxu0 0.0
    %321 = vmatpush1.xpose.msra.mxu0 0.0
    %322 = vmatprep.subr.mxu0 0.0
    %323 = vmatpush1.xpose.msra.mxu0 0.0
    %324 = vmatprep.subr.mxu0 0.0
    %325 = vmatpush1.xpose.msra.mxu0 0.0
    %326 = vmatprep.subr.mxu0 0.0
    %327 = vmatpush1.xpose.msra.mxu0 0.0
    %328 = vmatprep.subr.mxu0 0.0
    %329 = vmatpush1.xpose.msra.mxu0 0.0
    %330 = vmatprep.mubr.f32.mxu0 0.0
    %331 = vmatmul.mubr.f32.gmra.mrb[0].mxu0 %v262
    %v332 = vpop.f32.mrb[0].mxu0
    %v333 = vadd.f32 0.0, %v332
    %v334 = vpop.f32.mrb[0].mxu0
    %335 = vdwg.mxu0
    %337 = vrot.lane.b32.xlu0 %v165, 96
    %v338 = vpop.permute.xlu0 %337
    %v339 = vsel %vm261, %v165, 0
    %v341 = vsel %vm261, %v338, 0
    %343 = vmatprep.subr.mxu0 0.0
    %344 = vmatpush1.xpose.msra.mxu0 %v341
    %345 = vmatprep.subr.mxu0 0.0
    %346 = vmatpush1.xpose.msra.mxu0 0.0
    %347 = vmatprep.subr.mxu0 0.0
    %348 = vmatpush1.xpose.msra.mxu0 0.0
    %349 = vmatprep.subr.mxu0 0.0
    %350 = vmatpush1.xpose.msra.mxu0 0.0
    %351 = vmatprep.subr.mxu0 0.0
    %352 = vmatpush1.xpose.msra.mxu0 0.0
    %353 = vmatprep.subr.mxu0 0.0
    %354 = vmatpush1.xpose.msra.mxu0 0.0
    %355 = vmatprep.subr.mxu0 0.0
    %356 = vmatpush1.xpose.msra.mxu0 0.0
    %357 = vmatprep.subr.mxu0 0.0
    %358 = vmatpush1.xpose.msra.mxu0 0.0
    %359 = vmatprep.subr.mxu0 0.0
    %360 = vmatpush1.xpose.msra.mxu0 0.0
    %361 = vmatprep.subr.mxu0 0.0
    %362 = vmatpush1.xpose.msra.mxu0 0.0
    %363 = vmatprep.subr.mxu0 0.0
    %364 = vmatpush1.xpose.msra.mxu0 0.0
    %365 = vmatprep.subr.mxu0 0.0
    %366 = vmatpush1.xpose.msra.mxu0 0.0
    %367 = vmatprep.subr.mxu0 0.0
    %368 = vmatpush1.xpose.msra.mxu0 0.0
    %369 = vmatprep.subr.mxu0 0.0
    %370 = vmatpush1.xpose.msra.mxu0 0.0
    %371 = vmatprep.subr.mxu0 0.0
    %372 = vmatpush1.xpose.msra.mxu0 0.0
    %373 = vmatprep.subr.mxu0 0.0
    %374 = vmatpush1.xpose.msra.mxu0 0.0
    %375 = vmatprep.subr.mxu0 0.0
    %376 = vmatpush1.xpose.msra.mxu0 0.0
    %377 = vmatprep.subr.mxu0 0.0
    %378 = vmatpush1.xpose.msra.mxu0 0.0
    %379 = vmatprep.subr.mxu0 0.0
    %380 = vmatpush1.xpose.msra.mxu0 0.0
    %381 = vmatprep.subr.mxu0 0.0
    %382 = vmatpush1.xpose.msra.mxu0 0.0
    %383 = vmatprep.subr.mxu0 0.0
    %384 = vmatpush1.xpose.msra.mxu0 0.0
    %385 = vmatprep.subr.mxu0 0.0
    %386 = vmatpush1.xpose.msra.mxu0 0.0
    %387 = vmatprep.subr.mxu0 0.0
    %388 = vmatpush1.xpose.msra.mxu0 0.0
    %389 = vmatprep.subr.mxu0 0.0
    %390 = vmatpush1.xpose.msra.mxu0 0.0
    %391 = vmatprep.subr.mxu0 0.0
    %392 = vmatpush1.xpose.msra.mxu0 0.0
    %393 = vmatprep.subr.mxu0 0.0
    %394 = vmatpush1.xpose.msra.mxu0 0.0
    %395 = vmatprep.subr.mxu0 0.0
    %396 = vmatpush1.xpose.msra.mxu0 0.0
    %397 = vmatprep.subr.mxu0 0.0
    %398 = vmatpush1.xpose.msra.mxu0 0.0
    %399 = vmatprep.subr.mxu0 0.0
    %400 = vmatpush1.xpose.msra.mxu0 0.0
    %401 = vmatprep.subr.mxu0 0.0
    %402 = vmatpush1.xpose.msra.mxu0 0.0
    %403 = vmatprep.subr.mxu0 0.0
    %404 = vmatpush1.xpose.msra.mxu0 0.0
    %405 = vmatprep.subr.mxu0 0.0
    %406 = vmatpush1.xpose.msra.mxu0 0.0
    %407 = vmatprep.mubr.f32.mxu0 0.0
    %408 = vmatmul.mubr.f32.gmra.mrb[0].mxu0 %v339
    %v409 = vpop.f32.mrb[0].mxu0
    %v410 = vadd.f32 0.0, %v409
    %v411 = vpop.f32.mrb[0].mxu0
    %412 = vdwg.mxu0
    %v413 = vsel %vm261, %v333, -inf
    %414 = vmax.xlane.f32.xlu0 %v413
    %v415 = vpop.xlane.xlu0 %414
    %v416 = vsel %vm261, %v410, -inf
    %417 = vmax.xlane.f32.xlu0 %v416
    %v418 = vpop.xlane.xlu0 %417
    %v419 = vsub.f32 %v333, %v415
    %v420 = vsub.f32 %v410, %v418
    %v421 = vmul.f32 %v419, 1.442695
    %v422 = vpow.pop %v421
    %v423 = vmul.f32 %v420, 1.442695
    %v424 = vpow.pop %v423
    %v425 = vsel %vm261, %v422, 0.0
    %426 = vadd.xlane.f32.xlu0 %v425
    %v427 = vpop.xlane.xlu0 %426
    %v428 = vsel %vm261, %v424, 0.0
    %429 = vadd.xlane.f32.xlu0 %v428
    %v430 = vpop.xlane.xlu0 %429
    %v431 = vrcp.pop %v427
    %v432 = vrcp.pop %v430
    %v433 = vmul.f32 %v422, %v431
    %v434 = vmul.f32 %v424, %v432
    %v436 = vsel %vm261, %v433, 0
    %438 = vmatprep.subr.mxu0 0.0
    %439 = vmatpush1.msra.mxu0 %v250
    %440 = vmatprep.subr.mxu0 0.0
    %441 = vmatpush1.msra.mxu0 0.0
    %442 = vmatprep.subr.mxu0 0.0
    %443 = vmatpush1.msra.mxu0 0.0
    %444 = vmatprep.subr.mxu0 0.0
    %445 = vmatpush1.msra.mxu0 0.0
    %446 = vmatprep.subr.mxu0 0.0
    %447 = vmatpush1.msra.mxu0 0.0
    %448 = vmatprep.subr.mxu0 0.0
    %449 = vmatpush1.msra.mxu0 0.0
    %450 = vmatprep.subr.mxu0 0.0
    %451 = vmatpush1.msra.mxu0 0.0
    %452 = vmatprep.subr.mxu0 0.0
    %453 = vmatpush1.msra.mxu0 0.0
    %454 = vmatprep.subr.mxu0 0.0
    %455 = vmatpush1.msra.mxu0 0.0
    %456 = vmatprep.subr.mxu0 0.0
    %457 = vmatpush1.msra.mxu0 0.0
    %458 = vmatprep.subr.mxu0 0.0
    %459 = vmatpush1.msra.mxu0 0.0
    %460 = vmatprep.subr.mxu0 0.0
    %461 = vmatpush1.msra.mxu0 0.0
    %462 = vmatprep.subr.mxu0 0.0
    %463 = vmatpush1.msra.mxu0 0.0
    %464 = vmatprep.subr.mxu0 0.0
    %465 = vmatpush1.msra.mxu0 0.0
    %466 = vmatprep.subr.mxu0 0.0
    %467 = vmatpush1.msra.mxu0 0.0
    %468 = vmatprep.subr.mxu0 0.0
    %469 = vmatpush1.msra.mxu0 0.0
    %470 = vmatprep.subr.mxu0 0.0
    %471 = vmatpush1.msra.mxu0 0.0
    %472 = vmatprep.subr.mxu0 0.0
    %473 = vmatpush1.msra.mxu0 0.0
    %474 = vmatprep.subr.mxu0 0.0
    %475 = vmatpush1.msra.mxu0 0.0
    %476 = vmatprep.subr.mxu0 0.0
    %477 = vmatpush1.msra.mxu0 0.0
    %478 = vmatprep.subr.mxu0 0.0
    %479 = vmatpush1.msra.mxu0 0.0
    %480 = vmatprep.subr.mxu0 0.0
    %481 = vmatpush1.msra.mxu0 0.0
    %482 = vmatprep.subr.mxu0 0.0
    %483 = vmatpush1.msra.mxu0 0.0
    %484 = vmatprep.subr.mxu0 0.0
    %485 = vmatpush1.msra.mxu0 0.0
    %486 = vmatprep.subr.mxu0 0.0
    %487 = vmatpush1.msra.mxu0 0.0
    %488 = vmatprep.subr.mxu0 0.0
    %489 = vmatpush1.msra.mxu0 0.0
    %490 = vmatprep.subr.mxu0 0.0
    %491 = vmatpush1.msra.mxu0 0.0
    %492 = vmatprep.subr.mxu0 0.0
    %493 = vmatpush1.msra.mxu0 0.0
    %494 = vmatprep.subr.mxu0 0.0
    %495 = vmatpush1.msra.mxu0 0.0
    %496 = vmatprep.subr.mxu0 0.0
    %497 = vmatpush1.msra.mxu0 0.0
    %498 = vmatprep.subr.mxu0 0.0
    %499 = vmatpush1.msra.mxu0 0.0
    %500 = vmatprep.subr.mxu0 0.0
    %501 = vmatpush1.msra.mxu0 0.0
    %502 = vmatprep.mubr.f32.mxu0 0.0
    %503 = vmatmul.mubr.f32.gmra.mrb[0].mxu0 %v436
    %v504 = vpop.f32.mrb[0].mxu0
    %v505 = vadd.f32 0.0, %v504
    %v506 = vpop.f32.mrb[0].mxu0
    %507 = vdwg.mxu0
    %v509 = vsel %vm261, %v434, 0
    %511 = vmatprep.subr.mxu0 0.0
    %512 = vmatpush1.msra.mxu0 %v255
    %513 = vmatprep.subr.mxu0 0.0
    %514 = vmatpush1.msra.mxu0 0.0
    %515 = vmatprep.subr.mxu0 0.0
    %516 = vmatpush1.msra.mxu0 0.0
    %517 = vmatprep.subr.mxu0 0.0
    %518 = vmatpush1.msra.mxu0 0.0
    %519 = vmatprep.subr.mxu0 0.0
    %520 = vmatpush1.msra.mxu0 0.0
    %521 = vmatprep.subr.mxu0 0.0
    %522 = vmatpush1.msra.mxu0 0.0
    %523 = vmatprep.subr.mxu0 0.0
    %524 = vmatpush1.msra.mxu0 0.0
    %525 = vmatprep.subr.mxu0 0.0
    %526 = vmatpush1.msra.mxu0 0.0
    %527 = vmatprep.subr.mxu0 0.0
    %528 = vmatpush1.msra.mxu0 0.0
    %529 = vmatprep.subr.mxu0 0.0
    %530 = vmatpush1.msra.mxu0 0.0
    %531 = vmatprep.subr.mxu0 0.0
    %532 = vmatpush1.msra.mxu0 0.0
    %533 = vmatprep.subr.mxu0 0.0
    %534 = vmatpush1.msra.mxu0 0.0
    %535 = vmatprep.subr.mxu0 0.0
    %536 = vmatpush1.msra.mxu0 0.0
    %537 = vmatprep.subr.mxu0 0.0
    %538 = vmatpush1.msra.mxu0 0.0
    %539 = vmatprep.subr.mxu0 0.0
    %540 = vmatpush1.msra.mxu0 0.0
    %541 = vmatprep.subr.mxu0 0.0
    %542 = vmatpush1.msra.mxu0 0.0
    %543 = vmatprep.subr.mxu0 0.0
    %544 = vmatpush1.msra.mxu0 0.0
    %545 = vmatprep.subr.mxu0 0.0
    %546 = vmatpush1.msra.mxu0 0.0
    %547 = vmatprep.subr.mxu0 0.0
    %548 = vmatpush1.msra.mxu0 0.0
    %549 = vmatprep.subr.mxu0 0.0
    %550 = vmatpush1.msra.mxu0 0.0
    %551 = vmatprep.subr.mxu0 0.0
    %552 = vmatpush1.msra.mxu0 0.0
    %553 = vmatprep.subr.mxu0 0.0
    %554 = vmatpush1.msra.mxu0 0.0
    %555 = vmatprep.subr.mxu0 0.0
    %556 = vmatpush1.msra.mxu0 0.0
    %557 = vmatprep.subr.mxu0 0.0
    %558 = vmatpush1.msra.mxu0 0.0
    %559 = vmatprep.subr.mxu0 0.0
    %560 = vmatpush1.msra.mxu0 0.0
    %561 = vmatprep.subr.mxu0 0.0
    %562 = vmatpush1.msra.mxu0 0.0
    %563 = vmatprep.subr.mxu0 0.0
    %564 = vmatpush1.msra.mxu0 0.0
    %565 = vmatprep.subr.mxu0 0.0
    %566 = vmatpush1.msra.mxu0 0.0
    %567 = vmatprep.subr.mxu0 0.0
    %568 = vmatpush1.msra.mxu0 0.0
    %569 = vmatprep.subr.mxu0 0.0
    %570 = vmatpush1.msra.mxu0 0.0
    %571 = vmatprep.subr.mxu0 0.0
    %572 = vmatpush1.msra.mxu0 0.0
    %573 = vmatprep.subr.mxu0 0.0
    %574 = vmatpush1.msra.mxu0 0.0
    %575 = vmatprep.mubr.f32.mxu0 0.0
    %576 = vmatmul.mubr.f32.gmra.mrb[0].mxu0 %v509
    %v577 = vpop.f32.mrb[0].mxu0
    %v578 = vadd.f32 0.0, %v577
    %v579 = vpop.f32.mrb[0].mxu0
    %580 = vdwg.mxu0
    %581 = vrot.lane.b32.xlu0 %v160, 120
    %v582 = vpop.permute.xlu0 %581
    %583 = vrot.lane.b32.xlu0 %v160, 88
    %v584 = vpop.permute.xlu0 %583
    %v585 = vsel %vm261, %v582, 0
    %v587 = vsel %vm261, %v584, 0
    %589 = vmatprep.subr.mxu0 0.0
    %590 = vmatpush1.xpose.msra.mxu0 %v587
    %591 = vmatprep.subr.mxu0 0.0
    %592 = vmatpush1.xpose.msra.mxu0 0.0
    %593 = vmatprep.subr.mxu0 0.0
    %594 = vmatpush1.xpose.msra.mxu0 0.0
    %595 = vmatprep.subr.mxu0 0.0
    %596 = vmatpush1.xpose.msra.mxu0 0.0
    %597 = vmatprep.subr.mxu0 0.0
    %598 = vmatpush1.xpose.msra.mxu0 0.0
    %599 = vmatprep.subr.mxu0 0.0
    %600 = vmatpush1.xpose.msra.mxu0 0.0
    %601 = vmatprep.subr.mxu0 0.0
    %602 = vmatpush1.xpose.msra.mxu0 0.0
    %603 = vmatprep.subr.mxu0 0.0
    %604 = vmatpush1.xpose.msra.mxu0 0.0
    %605 = vmatprep.subr.mxu0 0.0
    %606 = vmatpush1.xpose.msra.mxu0 0.0
    %607 = vmatprep.subr.mxu0 0.0
    %608 = vmatpush1.xpose.msra.mxu0 0.0
    %609 = vmatprep.subr.mxu0 0.0
    %610 = vmatpush1.xpose.msra.mxu0 0.0
    %611 = vmatprep.subr.mxu0 0.0
    %612 = vmatpush1.xpose.msra.mxu0 0.0
    %613 = vmatprep.subr.mxu0 0.0
    %614 = vmatpush1.xpose.msra.mxu0 0.0
    %615 = vmatprep.subr.mxu0 0.0
    %616 = vmatpush1.xpose.msra.mxu0 0.0
    %617 = vmatprep.subr.mxu0 0.0
    %618 = vmatpush1.xpose.msra.mxu0 0.0
    %619 = vmatprep.subr.mxu0 0.0
    %620 = vmatpush1.xpose.msra.mxu0 0.0
    %621 = vmatprep.subr.mxu0 0.0
    %622 = vmatpush1.xpose.msra.mxu0 0.0
    %623 = vmatprep.subr.mxu0 0.0
    %624 = vmatpush1.xpose.msra.mxu0 0.0
    %625 = vmatprep.subr.mxu0 0.0
    %626 = vmatpush1.xpose.msra.mxu0 0.0
    %627 = vmatprep.subr.mxu0 0.0
    %628 = vmatpush1.xpose.msra.mxu0 0.0
    %629 = vmatprep.subr.mxu0 0.0
    %630 = vmatpush1.xpose.msra.mxu0 0.0
    %631 = vmatprep.subr.mxu0 0.0
    %632 = vmatpush1.xpose.msra.mxu0 0.0
    %633 = vmatprep.subr.mxu0 0.0
    %634 = vmatpush1.xpose.msra.mxu0 0.0
    %635 = vmatprep.subr.mxu0 0.0
    %636 = vmatpush1.xpose.msra.mxu0 0.0
    %637 = vmatprep.subr.mxu0 0.0
    %638 = vmatpush1.xpose.msra.mxu0 0.0
    %639 = vmatprep.subr.mxu0 0.0
    %640 = vmatpush1.xpose.msra.mxu0 0.0
    %641 = vmatprep.subr.mxu0 0.0
    %642 = vmatpush1.xpose.msra.mxu0 0.0
    %643 = vmatprep.subr.mxu0 0.0
    %644 = vmatpush1.xpose.msra.mxu0 0.0
    %645 = vmatprep.subr.mxu0 0.0
    %646 = vmatpush1.xpose.msra.mxu0 0.0
    %647 = vmatprep.subr.mxu0 0.0
    %648 = vmatpush1.xpose.msra.mxu0 0.0
    %649 = vmatprep.subr.mxu0 0.0
    %650 = vmatpush1.xpose.msra.mxu0 0.0
    %651 = vmatprep.subr.mxu0 0.0
    %652 = vmatpush1.xpose.msra.mxu0 0.0
    %653 = vmatprep.mubr.f32.mxu0 0.0
    %654 = vmatmul.mubr.f32.gmra.mrb[0].mxu0 %v585
    %v655 = vpop.f32.mrb[0].mxu0
    %v656 = vadd.f32 0.0, %v655
    %v657 = vpop.f32.mrb[0].mxu0
    %658 = vdwg.mxu0
    %659 = vrot.lane.b32.xlu0 %v165, 120
    %v660 = vpop.permute.xlu0 %659
    %661 = vrot.lane.b32.xlu0 %v165, 88
    %v662 = vpop.permute.xlu0 %661
    %v663 = vsel %vm261, %v660, 0
    %v665 = vsel %vm261, %v662, 0
    %667 = vmatprep.subr.mxu0 0.0
    %668 = vmatpush1.xpose.msra.mxu0 %v665
    %669 = vmatprep.subr.mxu0 0.0
    %670 = vmatpush1.xpose.msra.mxu0 0.0
    %671 = vmatprep.subr.mxu0 0.0
    %672 = vmatpush1.xpose.msra.mxu0 0.0
    %673 = vmatprep.subr.mxu0 0.0
    %674 = vmatpush1.xpose.msra.mxu0 0.0
    %675 = vmatprep.subr.mxu0 0.0
    %676 = vmatpush1.xpose.msra.mxu0 0.0
    %677 = vmatprep.subr.mxu0 0.0
    %678 = vmatpush1.xpose.msra.mxu0 0.0
    %679 = vmatprep.subr.mxu0 0.0
    %680 = vmatpush1.xpose.msra.mxu0 0.0
    %681 = vmatprep.subr.mxu0 0.0
    %682 = vmatpush1.xpose.msra.mxu0 0.0
    %683 = vmatprep.subr.mxu0 0.0
    %684 = vmatpush1.xpose.msra.mxu0 0.0
    %685 = vmatprep.subr.mxu0 0.0
    %686 = vmatpush1.xpose.msra.mxu0 0.0
    %687 = vmatprep.subr.mxu0 0.0
    %688 = vmatpush1.xpose.msra.mxu0 0.0
    %689 = vmatprep.subr.mxu0 0.0
    %690 = vmatpush1.xpose.msra.mxu0 0.0
    %691 = vmatprep.subr.mxu0 0.0
    %692 = vmatpush1.xpose.msra.mxu0 0.0
    %693 = vmatprep.subr.mxu0 0.0
    %694 = vmatpush1.xpose.msra.mxu0 0.0
    %695 = vmatprep.subr.mxu0 0.0
    %696 = vmatpush1.xpose.msra.mxu0 0.0
    %697 = vmatprep.subr.mxu0 0.0
    %698 = vmatpush1.xpose.msra.mxu0 0.0
    %699 = vmatprep.subr.mxu0 0.0
    %700 = vmatpush1.xpose.msra.mxu0 0.0
    %701 = vmatprep.subr.mxu0 0.0
    %702 = vmatpush1.xpose.msra.mxu0 0.0
    %703 = vmatprep.subr.mxu0 0.0
    %704 = vmatpush1.xpose.msra.mxu0 0.0
    %705 = vmatprep.subr.mxu0 0.0
    %706 = vmatpush1.xpose.msra.mxu0 0.0
    %707 = vmatprep.subr.mxu0 0.0
    %708 = vmatpush1.xpose.msra.mxu0 0.0
    %709 = vmatprep.subr.mxu0 0.0
    %710 = vmatpush1.xpose.msra.mxu0 0.0
    %711 = vmatprep.subr.mxu0 0.0
    %712 = vmatpush1.xpose.msra.mxu0 0.0
    %713 = vmatprep.subr.mxu0 0.0
    %714 = vmatpush1.xpose.msra.mxu0 0.0
    %715 = vmatprep.subr.mxu0 0.0
    %716 = vmatpush1.xpose.msra.mxu0 0.0
    %717 = vmatprep.subr.mxu0 0.0
    %718 = vmatpush1.xpose.msra.mxu0 0.0
    %719 = vmatprep.subr.mxu0 0.0
    %720 = vmatpush1.xpose.msra.mxu0 0.0
    %721 = vmatprep.subr.mxu0 0.0
    %722 = vmatpush1.xpose.msra.mxu0 0.0
    %723 = vmatprep.subr.mxu0 0.0
    %724 = vmatpush1.xpose.msra.mxu0 0.0
    %725 = vmatprep.subr.mxu0 0.0
    %726 = vmatpush1.xpose.msra.mxu0 0.0
    %727 = vmatprep.subr.mxu0 0.0
    %728 = vmatpush1.xpose.msra.mxu0 0.0
    %729 = vmatprep.subr.mxu0 0.0
    %730 = vmatpush1.xpose.msra.mxu0 0.0
    %731 = vmatprep.mubr.f32.mxu0 0.0
    %732 = vmatmul.mubr.f32.gmra.mrb[0].mxu0 %v663
    %v733 = vpop.f32.mrb[0].mxu0
    %v734 = vadd.f32 0.0, %v733
    %v735 = vpop.f32.mrb[0].mxu0
    %736 = vdwg.mxu0
    %v737 = vsel %vm261, %v656, -inf
    %738 = vmax.xlane.f32.xlu0 %v737
    %v739 = vpop.xlane.xlu0 %738
    %v740 = vsel %vm261, %v734, -inf
    %741 = vmax.xlane.f32.xlu0 %v740
    %v742 = vpop.xlane.xlu0 %741
    %v743 = vsub.f32 %v656, %v739
    %v744 = vsub.f32 %v734, %v742
    %v745 = vmul.f32 %v743, 1.442695
    %v746 = vpow.pop %v745
    %v747 = vmul.f32 %v744, 1.442695
    %v748 = vpow.pop %v747
    %v749 = vsel %vm261, %v746, 0.0
    %750 = vadd.xlane.f32.xlu0 %v749
    %v751 = vpop.xlane.xlu0 %750
    %v752 = vsel %vm261, %v748, 0.0
    %753 = vadd.xlane.f32.xlu0 %v752
    %v754 = vpop.xlane.xlu0 %753
    %v755 = vrcp.pop %v751
    %v756 = vrcp.pop %v754
    %v757 = vmul.f32 %v746, %v755
    %v758 = vmul.f32 %v748, %v756
    %760 = vrot.lane.b32.xlu0 %v250, 120
    %v761 = vpop.permute.xlu0 %760
    %v764 = vsel %vm261, %v757, 0
    %766 = vmatprep.subr.mxu0 0.0
    %767 = vmatpush1.msra.mxu0 %v761
    %768 = vmatprep.subr.mxu0 0.0
    %769 = vmatpush1.msra.mxu0 0.0
    %770 = vmatprep.subr.mxu0 0.0
    %771 = vmatpush1.msra.mxu0 0.0
    %772 = vmatprep.subr.mxu0 0.0
    %773 = vmatpush1.msra.mxu0 0.0
    %774 = vmatprep.subr.mxu0 0.0
    %775 = vmatpush1.msra.mxu0 0.0
    %776 = vmatprep.subr.mxu0 0.0
    %777 = vmatpush1.msra.mxu0 0.0
    %778 = vmatprep.subr.mxu0 0.0
    %779 = vmatpush1.msra.mxu0 0.0
    %780 = vmatprep.subr.mxu0 0.0
    %781 = vmatpush1.msra.mxu0 0.0
    %782 = vmatprep.subr.mxu0 0.0
    %783 = vmatpush1.msra.mxu0 0.0
    %784 = vmatprep.subr.mxu0 0.0
    %785 = vmatpush1.msra.mxu0 0.0
    %786 = vmatprep.subr.mxu0 0.0
    %787 = vmatpush1.msra.mxu0 0.0
    %788 = vmatprep.subr.mxu0 0.0
    %789 = vmatpush1.msra.mxu0 0.0
    %790 = vmatprep.subr.mxu0 0.0
    %791 = vmatpush1.msra.mxu0 0.0
    %792 = vmatprep.subr.mxu0 0.0
    %793 = vmatpush1.msra.mxu0 0.0
    %794 = vmatprep.subr.mxu0 0.0
    %795 = vmatpush1.msra.mxu0 0.0
    %796 = vmatprep.subr.mxu0 0.0
    %797 = vmatpush1.msra.mxu0 0.0
    %798 = vmatprep.subr.mxu0 0.0
    %799 = vmatpush1.msra.mxu0 0.0
    %800 = vmatprep.subr.mxu0 0.0
    %801 = vmatpush1.msra.mxu0 0.0
    %802 = vmatprep.subr.mxu0 0.0
    %803 = vmatpush1.msra.mxu0 0.0
    %804 = vmatprep.subr.mxu0 0.0
    %805 = vmatpush1.msra.mxu0 0.0
    %806 = vmatprep.subr.mxu0 0.0
    %807 = vmatpush1.msra.mxu0 0.0
    %808 = vmatprep.subr.mxu0 0.0
    %809 = vmatpush1.msra.mxu0 0.0
    %810 = vmatprep.subr.mxu0 0.0
    %811 = vmatpush1.msra.mxu0 0.0
    %812 = vmatprep.subr.mxu0 0.0
    %813 = vmatpush1.msra.mxu0 0.0
    %814 = vmatprep.subr.mxu0 0.0
    %815 = vmatpush1.msra.mxu0 0.0
    %816 = vmatprep.subr.mxu0 0.0
    %817 = vmatpush1.msra.mxu0 0.0
    %818 = vmatprep.subr.mxu0 0.0
    %819 = vmatpush1.msra.mxu0 0.0
    %820 = vmatprep.subr.mxu0 0.0
    %821 = vmatpush1.msra.mxu0 0.0
    %822 = vmatprep.subr.mxu0 0.0
    %823 = vmatpush1.msra.mxu0 0.0
    %824 = vmatprep.subr.mxu0 0.0
    %825 = vmatpush1.msra.mxu0 0.0
    %826 = vmatprep.subr.mxu0 0.0
    %827 = vmatpush1.msra.mxu0 0.0
    %828 = vmatprep.subr.mxu0 0.0
    %829 = vmatpush1.msra.mxu0 0.0
    %830 = vmatprep.mubr.f32.mxu0 0.0
    %831 = vmatmul.mubr.f32.gmra.mrb[0].mxu0 %v764
    %v832 = vpop.f32.mrb[0].mxu0
    %v833 = vadd.f32 0.0, %v832
    %v834 = vpop.f32.mrb[0].mxu0
    %835 = vdwg.mxu0
    %837 = vrot.lane.b32.xlu0 %v255, 120
    %v838 = vpop.permute.xlu0 %837
    %v841 = vsel %vm261, %v758, 0
    %843 = vmatprep.subr.mxu0 0.0
    %844 = vmatpush1.msra.mxu0 %v838
    %845 = vmatprep.subr.mxu0 0.0
    %846 = vmatpush1.msra.mxu0 0.0
    %847 = vmatprep.subr.mxu0 0.0
    %848 = vmatpush1.msra.mxu0 0.0
    %849 = vmatprep.subr.mxu0 0.0
    %850 = vmatpush1.msra.mxu0 0.0
    %851 = vmatprep.subr.mxu0 0.0
    %852 = vmatpush1.msra.mxu0 0.0
    %853 = vmatprep.subr.mxu0 0.0
    %854 = vmatpush1.msra.mxu0 0.0
    %855 = vmatprep.subr.mxu0 0.0
    %856 = vmatpush1.msra.mxu0 0.0
    %857 = vmatprep.subr.mxu0 0.0
    %858 = vmatpush1.msra.mxu0 0.0
    %859 = vmatprep.subr.mxu0 0.0
    %860 = vmatpush1.msra.mxu0 0.0
    %861 = vmatprep.subr.mxu0 0.0
    %862 = vmatpush1.msra.mxu0 0.0
    %863 = vmatprep.subr.mxu0 0.0
    %864 = vmatpush1.msra.mxu0 0.0
    %865 = vmatprep.subr.mxu0 0.0
    %866 = vmatpush1.msra.mxu0 0.0
    %867 = vmatprep.subr.mxu0 0.0
    %868 = vmatpush1.msra.mxu0 0.0
    %869 = vmatprep.subr.mxu0 0.0
    %870 = vmatpush1.msra.mxu0 0.0
    %871 = vmatprep.subr.mxu0 0.0
    %872 = vmatpush1.msra.mxu0 0.0
    %873 = vmatprep.subr.mxu0 0.0
    %874 = vmatpush1.msra.mxu0 0.0
    %875 = vmatprep.subr.mxu0 0.0
    %876 = vmatpush1.msra.mxu0 0.0
    %877 = vmatprep.subr.mxu0 0.0
    %878 = vmatpush1.msra.mxu0 0.0
    %879 = vmatprep.subr.mxu0 0.0
    %880 = vmatpush1.msra.mxu0 0.0
    %881 = vmatprep.subr.mxu0 0.0
    %882 = vmatpush1.msra.mxu0 0.0
    %883 = vmatprep.subr.mxu0 0.0
    %884 = vmatpush1.msra.mxu0 0.0
    %885 = vmatprep.subr.mxu0 0.0
    %886 = vmatpush1.msra.mxu0 0.0
    %887 = vmatprep.subr.mxu0 0.0
    %888 = vmatpush1.msra.mxu0 0.0
    %889 = vmatprep.subr.mxu0 0.0
    %890 = vmatpush1.msra.mxu0 0.0
    %891 = vmatprep.subr.mxu0 0.0
    %892 = vmatpush1.msra.mxu0 0.0
    %893 = vmatprep.subr.mxu0 0.0
    %894 = vmatpush1.msra.mxu0 0.0
    %895 = vmatprep.subr.mxu0 0.0
    %896 = vmatpush1.msra.mxu0 0.0
    %897 = vmatprep.subr.mxu0 0.0
    %898 = vmatpush1.msra.mxu0 0.0
    %899 = vmatprep.subr.mxu0 0.0
    %900 = vmatpush1.msra.mxu0 0.0
    %901 = vmatprep.subr.mxu0 0.0
    %902 = vmatpush1.msra.mxu0 0.0
    %903 = vmatprep.subr.mxu0 0.0
    %904 = vmatpush1.msra.mxu0 0.0
    %905 = vmatprep.subr.mxu0 0.0
    %906 = vmatpush1.msra.mxu0 0.0
    %907 = vmatprep.mubr.f32.mxu0 0.0
    %908 = vmatmul.mubr.f32.gmra.mrb[0].mxu0 %v841
    %v909 = vpop.f32.mrb[0].mxu0
    %v910 = vadd.f32 0.0, %v909
    %v911 = vpop.f32.mrb[0].mxu0
    %912 = vdwg.mxu0
    %913 = vrot.lane.b32.xlu0 %v160, 112
    %v914 = vpop.permute.xlu0 %913
    %915 = vrot.lane.b32.xlu0 %v160, 80
    %v916 = vpop.permute.xlu0 %915
    %v917 = vsel %vm261, %v914, 0
    %v919 = vsel %vm261, %v916, 0
    %921 = vmatprep.subr.mxu0 0.0
    %922 = vmatpush1.xpose.msra.mxu0 %v919
    %923 = vmatprep.subr.mxu0 0.0
    %924 = vmatpush1.xpose.msra.mxu0 0.0
    %925 = vmatprep.subr.mxu0 0.0
    %926 = vmatpush1.xpose.msra.mxu0 0.0
    %927 = vmatprep.subr.mxu0 0.0
    %928 = vmatpush1.xpose.msra.mxu0 0.0
    %929 = vmatprep.subr.mxu0 0.0
    %930 = vmatpush1.xpose.msra.mxu0 0.0
    %931 = vmatprep.subr.mxu0 0.0
    %932 = vmatpush1.xpose.msra.mxu0 0.0
    %933 = vmatprep.subr.mxu0 0.0
    %934 = vmatpush1.xpose.msra.mxu0 0.0
    %935 = vmatprep.subr.mxu0 0.0
    %936 = vmatpush1.xpose.msra.mxu0 0.0
    %937 = vmatprep.subr.mxu0 0.0
    %938 = vmatpush1.xpose.msra.mxu0 0.0
    %939 = vmatprep.subr.mxu0 0.0
    %940 = vmatpush1.xpose.msra.mxu0 0.0
    %941 = vmatprep.subr.mxu0 0.0
    %942 = vmatpush1.xpose.msra.mxu0 0.0
    %943 = vmatprep.subr.mxu0 0.0
    %944 = vmatpush1.xpose.msra.mxu0 0.0
    %945 = vmatprep.subr.mxu0 0.0
    %946 = vmatpush1.xpose.msra.mxu0 0.0
    %947 = vmatprep.subr.mxu0 0.0
    %948 = vmatpush1.xpose.msra.mxu0 0.0
    %949 = vmatprep.subr.mxu0 0.0
    %950 = vmatpush1.xpose.msra.mxu0 0.0
    %951 = vmatprep.subr.mxu0 0.0
    %952 = vmatpush1.xpose.msra.mxu0 0.0
    %953 = vmatprep.subr.mxu0 0.0
    %954 = vmatpush1.xpose.msra.mxu0 0.0
    %955 = vmatprep.subr.mxu0 0.0
    %956 = vmatpush1.xpose.msra.mxu0 0.0
    %957 = vmatprep.subr.mxu0 0.0
    %958 = vmatpush1.xpose.msra.mxu0 0.0
    %959 = vmatprep.subr.mxu0 0.0
    %960 = vmatpush1.xpose.msra.mxu0 0.0
    %961 = vmatprep.subr.mxu0 0.0
    %962 = vmatpush1.xpose.msra.mxu0 0.0
    %963 = vmatprep.subr.mxu0 0.0
    %964 = vmatpush1.xpose.msra.mxu0 0.0
    %965 = vmatprep.subr.mxu0 0.0
    %966 = vmatpush1.xpose.msra.mxu0 0.0
    %967 = vmatprep.subr.mxu0 0.0
    %968 = vmatpush1.xpose.msra.mxu0 0.0
    %969 = vmatprep.subr.mxu0 0.0
    %970 = vmatpush1.xpose.msra.mxu0 0.0
    %971 = vmatprep.subr.mxu0 0.0
    %972 = vmatpush1.xpose.msra.mxu0 0.0
    %973 = vmatprep.subr.mxu0 0.0
    %974 = vmatpush1.xpose.msra.mxu0 0.0
    %975 = vmatprep.subr.mxu0 0.0
    %976 = vmatpush1.xpose.msra.mxu0 0.0
    %977 = vmatprep.subr.mxu0 0.0
    %978 = vmatpush1.xpose.msra.mxu0 0.0
    %979 = vmatprep.subr.mxu0 0.0
    %980 = vmatpush1.xpose.msra.mxu0 0.0
    %981 = vmatprep.subr.mxu0 0.0
    %982 = vmatpush1.xpose.msra.mxu0 0.0
    %983 = vmatprep.subr.mxu0 0.0
    %984 = vmatpush1.xpose.msra.mxu0 0.0
    %985 = vmatprep.mubr.f32.mxu0 0.0
    %986 = vmatmul.mubr.f32.gmra.mrb[0].mxu0 %v917
    %v987 = vpop.f32.mrb[0].mxu0
    %v988 = vadd.f32 0.0, %v987
    %v989 = vpop.f32.mrb[0].mxu0
    %990 = vdwg.mxu0
    %991 = vrot.lane.b32.xlu0 %v165, 112
    %v992 = vpop.permute.xlu0 %991
    %993 = vrot.lane.b32.xlu0 %v165, 80
    %v994 = vpop.permute.xlu0 %993
    %v995 = vsel %vm261, %v992, 0
    %v997 = vsel %vm261, %v994, 0
    %999 = vmatprep.subr.mxu0 0.0
    %1000 = vmatpush1.xpose.msra.mxu0 %v997
    %1001 = vmatprep.subr.mxu0 0.0
    %1002 = vmatpush1.xpose.msra.mxu0 0.0
    %1003 = vmatprep.subr.mxu0 0.0
    %1004 = vmatpush1.xpose.msra.mxu0 0.0
    %1005 = vmatprep.subr.mxu0 0.0
    %1006 = vmatpush1.xpose.msra.mxu0 0.0
    %1007 = vmatprep.subr.mxu0 0.0
    %1008 = vmatpush1.xpose.msra.mxu0 0.0
    %1009 = vmatprep.subr.mxu0 0.0
    %1010 = vmatpush1.xpose.msra.mxu0 0.0
    %1011 = vmatprep.subr.mxu0 0.0
    %1012 = vmatpush1.xpose.msra.mxu0 0.0
    %1013 = vmatprep.subr.mxu0 0.0
    %1014 = vmatpush1.xpose.msra.mxu0 0.0
    %1015 = vmatprep.subr.mxu0 0.0
    %1016 = vmatpush1.xpose.msra.mxu0 0.0
    %1017 = vmatprep.subr.mxu0 0.0
    %1018 = vmatpush1.xpose.msra.mxu0 0.0
    %1019 = vmatprep.subr.mxu0 0.0
    %1020 = vmatpush1.xpose.msra.mxu0 0.0
    %1021 = vmatprep.subr.mxu0 0.0
    %1022 = vmatpush1.xpose.msra.mxu0 0.0
    %1023 = vmatprep.subr.mxu0 0.0
    %1024 = vmatpush1.xpose.msra.mxu0 0.0
    %1025 = vmatprep.subr.mxu0 0.0
    %1026 = vmatpush1.xpose.msra.mxu0 0.0
    %1027 = vmatprep.subr.mxu0 0.0
    %1028 = vmatpush1.xpose.msra.mxu0 0.0
    %1029 = vmatprep.subr.mxu0 0.0
    %1030 = vmatpush1.xpose.msra.mxu0 0.0
    %1031 = vmatprep.subr.mxu0 0.0
    %1032 = vmatpush1.xpose.msra.mxu0 0.0
    %1033 = vmatprep.subr.mxu0 0.0
    %1034 = vmatpush1.xpose.msra.mxu0 0.0
    %1035 = vmatprep.subr.mxu0 0.0
    %1036 = vmatpush1.xpose.msra.mxu0 0.0
    %1037 = vmatprep.subr.mxu0 0.0
    %1038 = vmatpush1.xpose.msra.mxu0 0.0
    %1039 = vmatprep.subr.mxu0 0.0
    %1040 = vmatpush1.xpose.msra.mxu0 0.0
    %1041 = vmatprep.subr.mxu0 0.0
    %1042 = vmatpush1.xpose.msra.mxu0 0.0
    %1043 = vmatprep.subr.mxu0 0.0
    %1044 = vmatpush1.xpose.msra.mxu0 0.0
    %1045 = vmatprep.subr.mxu0 0.0
    %1046 = vmatpush1.xpose.msra.mxu0 0.0
    %1047 = vmatprep.subr.mxu0 0.0
    %1048 = vmatpush1.xpose.msra.mxu0 0.0
    %1049 = vmatprep.subr.mxu0 0.0
    %1050 = vmatpush1.xpose.msra.mxu0 0.0
    %1051 = vmatprep.subr.mxu0 0.0
    %1052 = vmatpush1.xpose.msra.mxu0 0.0
    %1053 = vmatprep.subr.mxu0 0.0
    %1054 = vmatpush1.xpose.msra.mxu0 0.0
    %1055 = vmatprep.subr.mxu0 0.0
    %1056 = vmatpush1.xpose.msra.mxu0 0.0
    %1057 = vmatprep.subr.mxu0 0.0
    %1058 = vmatpush1.xpose.msra.mxu0 0.0
    %1059 = vmatprep.subr.mxu0 0.0
    %1060 = vmatpush1.xpose.msra.mxu0 0.0
    %1061 = vmatprep.subr.mxu0 0.0
    %1062 = vmatpush1.xpose.msra.mxu0 0.0
    %1063 = vmatprep.mubr.f32.mxu0 0.0
    %1064 = vmatmul.mubr.f32.gmra.mrb[0].mxu0 %v995
    %v1065 = vpop.f32.mrb[0].mxu0
    %v1066 = vadd.f32 0.0, %v1065
    %v1067 = vpop.f32.mrb[0].mxu0
    %1068 = vdwg.mxu0
    %v1069 = vsel %vm261, %v988, -inf
    %1070 = vmax.xlane.f32.xlu0 %v1069
    %v1071 = vpop.xlane.xlu0 %1070
    %v1072 = vsel %vm261, %v1066, -inf
    %1073 = vmax.xlane.f32.xlu0 %v1072
    %v1074 = vpop.xlane.xlu0 %1073
    %v1075 = vsub.f32 %v988, %v1071
    %v1076 = vsub.f32 %v1066, %v1074
    %v1077 = vmul.f32 %v1075, 1.442695
    %v1078 = vpow.pop %v1077
    %v1079 = vmul.f32 %v1076, 1.442695
    %v1080 = vpow.pop %v1079
    %v1081 = vsel %vm261, %v1078, 0.0
    %1082 = vadd.xlane.f32.xlu0 %v1081
    %v1083 = vpop.xlane.xlu0 %1082
    %v1084 = vsel %vm261, %v1080, 0.0
    %1085 = vadd.xlane.f32.xlu0 %v1084
    %v1086 = vpop.xlane.xlu0 %1085
    %v1087 = vrcp.pop %v1083
    %v1088 = vrcp.pop %v1086
    %v1089 = vmul.f32 %v1078, %v1087
    %v1090 = vmul.f32 %v1080, %v1088
    %1091 = vrot.lane.b32.xlu0 %v250, 112
    %v1092 = vpop.permute.xlu0 %1091
    %v1095 = vsel %vm261, %v1089, 0
    %1097 = vmatprep.subr.mxu0 0.0
    %1098 = vmatpush1.msra.mxu0 %v1092
    %1099 = vmatprep.subr.mxu0 0.0
    %1100 = vmatpush1.msra.mxu0 0.0
    %1101 = vmatprep.subr.mxu0 0.0
    %1102 = vmatpush1.msra.mxu0 0.0
    %1103 = vmatprep.subr.mxu0 0.0
    %1104 = vmatpush1.msra.mxu0 0.0
    %1105 = vmatprep.subr.mxu0 0.0
    %1106 = vmatpush1.msra.mxu0 0.0
    %1107 = vmatprep.subr.mxu0 0.0
    %1108 = vmatpush1.msra.mxu0 0.0
    %1109 = vmatprep.subr.mxu0 0.0
    %1110 = vmatpush1.msra.mxu0 0.0
    %1111 = vmatprep.subr.mxu0 0.0
    %1112 = vmatpush1.msra.mxu0 0.0
    %1113 = vmatprep.subr.mxu0 0.0
    %1114 = vmatpush1.msra.mxu0 0.0
    %1115 = vmatprep.subr.mxu0 0.0
    %1116 = vmatpush1.msra.mxu0 0.0
    %1117 = vmatprep.subr.mxu0 0.0
    %1118 = vmatpush1.msra.mxu0 0.0
    %1119 = vmatprep.subr.mxu0 0.0
    %1120 = vmatpush1.msra.mxu0 0.0
    %1121 = vmatprep.subr.mxu0 0.0
    %1122 = vmatpush1.msra.mxu0 0.0
    %1123 = vmatprep.subr.mxu0 0.0
    %1124 = vmatpush1.msra.mxu0 0.0
    %1125 = vmatprep.subr.mxu0 0.0
    %1126 = vmatpush1.msra.mxu0 0.0
    %1127 = vmatprep.subr.mxu0 0.0
    %1128 = vmatpush1.msra.mxu0 0.0
    %1129 = vmatprep.subr.mxu0 0.0
    %1130 = vmatpush1.msra.mxu0 0.0
    %1131 = vmatprep.subr.mxu0 0.0
    %1132 = vmatpush1.msra.mxu0 0.0
    %1133 = vmatprep.subr.mxu0 0.0
    %1134 = vmatpush1.msra.mxu0 0.0
    %1135 = vmatprep.subr.mxu0 0.0
    %1136 = vmatpush1.msra.mxu0 0.0
    %1137 = vmatprep.subr.mxu0 0.0
    %1138 = vmatpush1.msra.mxu0 0.0
    %1139 = vmatprep.subr.mxu0 0.0
    %1140 = vmatpush1.msra.mxu0 0.0
    %1141 = vmatprep.subr.mxu0 0.0
    %1142 = vmatpush1.msra.mxu0 0.0
    %1143 = vmatprep.subr.mxu0 0.0
    %1144 = vmatpush1.msra.mxu0 0.0
    %1145 = vmatprep.subr.mxu0 0.0
    %1146 = vmatpush1.msra.mxu0 0.0
    %1147 = vmatprep.subr.mxu0 0.0
    %1148 = vmatpush1.msra.mxu0 0.0
    %1149 = vmatprep.subr.mxu0 0.0
    %1150 = vmatpush1.msra.mxu0 0.0
    %1151 = vmatprep.subr.mxu0 0.0
    %1152 = vmatpush1.msra.mxu0 0.0
    %1153 = vmatprep.subr.mxu0 0.0
    %1154 = vmatpush1.msra.mxu0 0.0
    %1155 = vmatprep.subr.mxu0 0.0
    %1156 = vmatpush1.msra.mxu0 0.0
    %1157 = vmatprep.subr.mxu0 0.0
    %1158 = vmatpush1.msra.mxu0 0.0
    %1159 = vmatprep.subr.mxu0 0.0
    %1160 = vmatpush1.msra.mxu0 0.0
    %1161 = vmatprep.mubr.f32.mxu0 0.0
    %1162 = vmatmul.mubr.f32.gmra.mrb[0].mxu0 %v1095
    %v1163 = vpop.f32.mrb[0].mxu0
    %v1164 = vadd.f32 0.0, %v1163
    %v1165 = vpop.f32.mrb[0].mxu0
    %1166 = vdwg.mxu0
    %1167 = vrot.lane.b32.xlu0 %v255, 112
    %v1168 = vpop.permute.xlu0 %1167
    %v1171 = vsel %vm261, %v1090, 0
    %1173 = vmatprep.subr.mxu0 0.0
    %1174 = vmatpush1.msra.mxu0 %v1168
    %1175 = vmatprep.subr.mxu0 0.0
    %1176 = vmatpush1.msra.mxu0 0.0
    %1177 = vmatprep.subr.mxu0 0.0
    %1178 = vmatpush1.msra.mxu0 0.0
    %1179 = vmatprep.subr.mxu0 0.0
    %1180 = vmatpush1.msra.mxu0 0.0
    %1181 = vmatprep.subr.mxu0 0.0
    %1182 = vmatpush1.msra.mxu0 0.0
    %1183 = vmatprep.subr.mxu0 0.0
    %1184 = vmatpush1.msra.mxu0 0.0
    %1185 = vmatprep.subr.mxu0 0.0
    %1186 = vmatpush1.msra.mxu0 0.0
    %1187 = vmatprep.subr.mxu0 0.0
    %1188 = vmatpush1.msra.mxu0 0.0
    %1189 = vmatprep.subr.mxu0 0.0
    %1190 = vmatpush1.msra.mxu0 0.0
    %1191 = vmatprep.subr.mxu0 0.0
    %1192 = vmatpush1.msra.mxu0 0.0
    %1193 = vmatprep.subr.mxu0 0.0
    %1194 = vmatpush1.msra.mxu0 0.0
    %1195 = vmatprep.subr.mxu0 0.0
    %1196 = vmatpush1.msra.mxu0 0.0
    %1197 = vmatprep.subr.mxu0 0.0
    %1198 = vmatpush1.msra.mxu0 0.0
    %1199 = vmatprep.subr.mxu0 0.0
    %1200 = vmatpush1.msra.mxu0 0.0
    %1201 = vmatprep.subr.mxu0 0.0
    %1202 = vmatpush1.msra.mxu0 0.0
    %1203 = vmatprep.subr.mxu0 0.0
    %1204 = vmatpush1.msra.mxu0 0.0
    %1205 = vmatprep.subr.mxu0 0.0
    %1206 = vmatpush1.msra.mxu0 0.0
    %1207 = vmatprep.subr.mxu0 0.0
    %1208 = vmatpush1.msra.mxu0 0.0
    %1209 = vmatprep.subr.mxu0 0.0
    %1210 = vmatpush1.msra.mxu0 0.0
    %1211 = vmatprep.subr.mxu0 0.0
    %1212 = vmatpush1.msra.mxu0 0.0
    %1213 = vmatprep.subr.mxu0 0.0
    %1214 = vmatpush1.msra.mxu0 0.0
    %1215 = vmatprep.subr.mxu0 0.0
    %1216 = vmatpush1.msra.mxu0 0.0
    %1217 = vmatprep.subr.mxu0 0.0
    %1218 = vmatpush1.msra.mxu0 0.0
    %1219 = vmatprep.subr.mxu0 0.0
    %1220 = vmatpush1.msra.mxu0 0.0
    %1221 = vmatprep.subr.mxu0 0.0
    %1222 = vmatpush1.msra.mxu0 0.0
    %1223 = vmatprep.subr.mxu0 0.0
    %1224 = vmatpush1.msra.mxu0 0.0
    %1225 = vmatprep.subr.mxu0 0.0
    %1226 = vmatpush1.msra.mxu0 0.0
    %1227 = vmatprep.subr.mxu0 0.0
    %1228 = vmatpush1.msra.mxu0 0.0
    %1229 = vmatprep.subr.mxu0 0.0
    %1230 = vmatpush1.msra.mxu0 0.0
    %1231 = vmatprep.subr.mxu0 0.0
    %1232 = vmatpush1.msra.mxu0 0.0
    %1233 = vmatprep.subr.mxu0 0.0
    %1234 = vmatpush1.msra.mxu0 0.0
    %1235 = vmatprep.subr.mxu0 0.0
    %1236 = vmatpush1.msra.mxu0 0.0
    %1237 = vmatprep.mubr.f32.mxu0 0.0
    %1238 = vmatmul.mubr.f32.gmra.mrb[0].mxu0 %v1171
    %v1239 = vpop.f32.mrb[0].mxu0
    %v1240 = vadd.f32 0.0, %v1239
    %v1241 = vpop.f32.mrb[0].mxu0
    %1242 = vdwg.mxu0
    %1243 = vrot.lane.b32.xlu0 %v160, 104
    %v1244 = vpop.permute.xlu0 %1243
    %1245 = vrot.lane.b32.xlu0 %v160, 72
    %v1246 = vpop.permute.xlu0 %1245
    %v1247 = vsel %vm261, %v1244, 0
    %v1249 = vsel %vm261, %v1246, 0
    %1251 = vmatprep.subr.mxu0 0.0
    %1252 = vmatpush1.xpose.msra.mxu0 %v1249
    %1253 = vmatprep.subr.mxu0 0.0
    %1254 = vmatpush1.xpose.msra.mxu0 0.0
    %1255 = vmatprep.subr.mxu0 0.0
    %1256 = vmatpush1.xpose.msra.mxu0 0.0
    %1257 = vmatprep.subr.mxu0 0.0
    %1258 = vmatpush1.xpose.msra.mxu0 0.0
    %1259 = vmatprep.subr.mxu0 0.0
    %1260 = vmatpush1.xpose.msra.mxu0 0.0
    %1261 = vmatprep.subr.mxu0 0.0
    %1262 = vmatpush1.xpose.msra.mxu0 0.0
    %1263 = vmatprep.subr.mxu0 0.0
    %1264 = vmatpush1.xpose.msra.mxu0 0.0
    %1265 = vmatprep.subr.mxu0 0.0
    %1266 = vmatpush1.xpose.msra.mxu0 0.0
    %1267 = vmatprep.subr.mxu0 0.0
    %1268 = vmatpush1.xpose.msra.mxu0 0.0
    %1269 = vmatprep.subr.mxu0 0.0
    %1270 = vmatpush1.xpose.msra.mxu0 0.0
    %1271 = vmatprep.subr.mxu0 0.0
    %1272 = vmatpush1.xpose.msra.mxu0 0.0
    %1273 = vmatprep.subr.mxu0 0.0
    %1274 = vmatpush1.xpose.msra.mxu0 0.0
    %1275 = vmatprep.subr.mxu0 0.0
    %1276 = vmatpush1.xpose.msra.mxu0 0.0
    %1277 = vmatprep.subr.mxu0 0.0
    %1278 = vmatpush1.xpose.msra.mxu0 0.0
    %1279 = vmatprep.subr.mxu0 0.0
    %1280 = vmatpush1.xpose.msra.mxu0 0.0
    %1281 = vmatprep.subr.mxu0 0.0
    %1282 = vmatpush1.xpose.msra.mxu0 0.0
    %1283 = vmatprep.subr.mxu0 0.0
    %1284 = vmatpush1.xpose.msra.mxu0 0.0
    %1285 = vmatprep.subr.mxu0 0.0
    %1286 = vmatpush1.xpose.msra.mxu0 0.0
    %1287 = vmatprep.subr.mxu0 0.0
    %1288 = vmatpush1.xpose.msra.mxu0 0.0
    %1289 = vmatprep.subr.mxu0 0.0
    %1290 = vmatpush1.xpose.msra.mxu0 0.0
    %1291 = vmatprep.subr.mxu0 0.0
    %1292 = vmatpush1.xpose.msra.mxu0 0.0
    %1293 = vmatprep.subr.mxu0 0.0
    %1294 = vmatpush1.xpose.msra.mxu0 0.0
    %1295 = vmatprep.subr.mxu0 0.0
    %1296 = vmatpush1.xpose.msra.mxu0 0.0
    %1297 = vmatprep.subr.mxu0 0.0
    %1298 = vmatpush1.xpose.msra.mxu0 0.0
    %1299 = vmatprep.subr.mxu0 0.0
    %1300 = vmatpush1.xpose.msra.mxu0 0.0
    %1301 = vmatprep.subr.mxu0 0.0
    %1302 = vmatpush1.xpose.msra.mxu0 0.0
    %1303 = vmatprep.subr.mxu0 0.0
    %1304 = vmatpush1.xpose.msra.mxu0 0.0
    %1305 = vmatprep.subr.mxu0 0.0
    %1306 = vmatpush1.xpose.msra.mxu0 0.0
    %1307 = vmatprep.subr.mxu0 0.0
    %1308 = vmatpush1.xpose.msra.mxu0 0.0
    %1309 = vmatprep.subr.mxu0 0.0
    %1310 = vmatpush1.xpose.msra.mxu0 0.0
    %1311 = vmatprep.subr.mxu0 0.0
    %1312 = vmatpush1.xpose.msra.mxu0 0.0
    %1313 = vmatprep.subr.mxu0 0.0
    %1314 = vmatpush1.xpose.msra.mxu0 0.0
    %1315 = vmatprep.mubr.f32.mxu0 0.0
    %1316 = vmatmul.mubr.f32.gmra.mrb[0].mxu0 %v1247
    %v1317 = vpop.f32.mrb[0].mxu0
    %v1318 = vadd.f32 0.0, %v1317
    %v1319 = vpop.f32.mrb[0].mxu0
    %1320 = vdwg.mxu0
    %1321 = vrot.lane.b32.xlu0 %v165, 104
    %v1322 = vpop.permute.xlu0 %1321
    %1323 = vrot.lane.b32.xlu0 %v165, 72
    %v1324 = vpop.permute.xlu0 %1323
    %v1325 = vsel %vm261, %v1322, 0
    %v1327 = vsel %vm261, %v1324, 0
    %1329 = vmatprep.subr.mxu0 0.0
    %1330 = vmatpush1.xpose.msra.mxu0 %v1327
    %1331 = vmatprep.subr.mxu0 0.0
    %1332 = vmatpush1.xpose.msra.mxu0 0.0
    %1333 = vmatprep.subr.mxu0 0.0
    %1334 = vmatpush1.xpose.msra.mxu0 0.0
    %1335 = vmatprep.subr.mxu0 0.0
    %1336 = vmatpush1.xpose.msra.mxu0 0.0
    %1337 = vmatprep.subr.mxu0 0.0
    %1338 = vmatpush1.xpose.msra.mxu0 0.0
    %1339 = vmatprep.subr.mxu0 0.0
    %1340 = vmatpush1.xpose.msra.mxu0 0.0
    %1341 = vmatprep.subr.mxu0 0.0
    %1342 = vmatpush1.xpose.msra.mxu0 0.0
    %1343 = vmatprep.subr.mxu0 0.0
    %1344 = vmatpush1.xpose.msra.mxu0 0.0
    %1345 = vmatprep.subr.mxu0 0.0
    %1346 = vmatpush1.xpose.msra.mxu0 0.0
    %1347 = vmatprep.subr.mxu0 0.0
    %1348 = vmatpush1.xpose.msra.mxu0 0.0
    %1349 = vmatprep.subr.mxu0 0.0
    %1350 = vmatpush1.xpose.msra.mxu0 0.0
    %1351 = vmatprep.subr.mxu0 0.0
    %1352 = vmatpush1.xpose.msra.mxu0 0.0
    %1353 = vmatprep.subr.mxu0 0.0
    %1354 = vmatpush1.xpose.msra.mxu0 0.0
    %1355 = vmatprep.subr.mxu0 0.0
    %1356 = vmatpush1.xpose.msra.mxu0 0.0
    %1357 = vmatprep.subr.mxu0 0.0
    %1358 = vmatpush1.xpose.msra.mxu0 0.0
    %1359 = vmatprep.subr.mxu0 0.0
    %1360 = vmatpush1.xpose.msra.mxu0 0.0
    %1361 = vmatprep.subr.mxu0 0.0
    %1362 = vmatpush1.xpose.msra.mxu0 0.0
    %1363 = vmatprep.subr.mxu0 0.0
    %1364 = vmatpush1.xpose.msra.mxu0 0.0
    %1365 = vmatprep.subr.mxu0 0.0
    %1366 = vmatpush1.xpose.msra.mxu0 0.0
    %1367 = vmatprep.subr.mxu0 0.0
    %1368 = vmatpush1.xpose.msra.mxu0 0.0
    %1369 = vmatprep.subr.mxu0 0.0
    %1370 = vmatpush1.xpose.msra.mxu0 0.0
    %1371 = vmatprep.subr.mxu0 0.0
    %1372 = vmatpush1.xpose.msra.mxu0 0.0
    %1373 = vmatprep.subr.mxu0 0.0
    %1374 = vmatpush1.xpose.msra.mxu0 0.0
    %1375 = vmatprep.subr.mxu0 0.0
    %1376 = vmatpush1.xpose.msra.mxu0 0.0
    %1377 = vmatprep.subr.mxu0 0.0
    %1378 = vmatpush1.xpose.msra.mxu0 0.0
    %1379 = vmatprep.subr.mxu0 0.0
    %1380 = vmatpush1.xpose.msra.mxu0 0.0
    %1381 = vmatprep.subr.mxu0 0.0
    %1382 = vmatpush1.xpose.msra.mxu0 0.0
    %1383 = vmatprep.subr.mxu0 0.0
    %1384 = vmatpush1.xpose.msra.mxu0 0.0
    %1385 = vmatprep.subr.mxu0 0.0
    %1386 = vmatpush1.xpose.msra.mxu0 0.0
    %1387 = vmatprep.subr.mxu0 0.0
    %1388 = vmatpush1.xpose.msra.mxu0 0.0
    %1389 = vmatprep.subr.mxu0 0.0
    %1390 = vmatpush1.xpose.msra.mxu0 0.0
    %1391 = vmatprep.subr.mxu0 0.0
    %1392 = vmatpush1.xpose.msra.mxu0 0.0
    %1393 = vmatprep.mubr.f32.mxu0 0.0
    %1394 = vmatmul.mubr.f32.gmra.mrb[0].mxu0 %v1325
    %v1395 = vpop.f32.mrb[0].mxu0
    %v1396 = vadd.f32 0.0, %v1395
    %v1397 = vpop.f32.mrb[0].mxu0
    %1398 = vdwg.mxu0
    %v1399 = vsel %vm261, %v1318, -inf
    %1400 = vmax.xlane.f32.xlu0 %v1399
    %v1401 = vpop.xlane.xlu0 %1400
    %v1402 = vsel %vm261, %v1396, -inf
    %1403 = vmax.xlane.f32.xlu0 %v1402
    %v1404 = vpop.xlane.xlu0 %1403
    %v1405 = vsub.f32 %v1318, %v1401
    %v1406 = vsub.f32 %v1396, %v1404
    %v1407 = vmul.f32 %v1405, 1.442695
    %v1408 = vpow.pop %v1407
    %v1409 = vmul.f32 %v1406, 1.442695
    %v1410 = vpow.pop %v1409
    %v1411 = vsel %vm261, %v1408, 0.0
    %1412 = vadd.xlane.f32.xlu0 %v1411
    %v1413 = vpop.xlane.xlu0 %1412
    %v1414 = vsel %vm261, %v1410, 0.0
    %1415 = vadd.xlane.f32.xlu0 %v1414
    %v1416 = vpop.xlane.xlu0 %1415
    %v1417 = vrcp.pop %v1413
    %v1418 = vrcp.pop %v1416
    %v1419 = vmul.f32 %v1408, %v1417
    %v1420 = vmul.f32 %v1410, %v1418
    %1421 = vrot.lane.b32.xlu0 %v250, 104
    %v1422 = vpop.permute.xlu0 %1421
    %v1425 = vsel %vm261, %v1419, 0
    %1427 = vmatprep.subr.mxu0 0.0
    %1428 = vmatpush1.msra.mxu0 %v1422
    %1429 = vmatprep.subr.mxu0 0.0
    %1430 = vmatpush1.msra.mxu0 0.0
    %1431 = vmatprep.subr.mxu0 0.0
    %1432 = vmatpush1.msra.mxu0 0.0
    %1433 = vmatprep.subr.mxu0 0.0
    %1434 = vmatpush1.msra.mxu0 0.0
    %1435 = vmatprep.subr.mxu0 0.0
    %1436 = vmatpush1.msra.mxu0 0.0
    %1437 = vmatprep.subr.mxu0 0.0
    %1438 = vmatpush1.msra.mxu0 0.0
    %1439 = vmatprep.subr.mxu0 0.0
    %1440 = vmatpush1.msra.mxu0 0.0
    %1441 = vmatprep.subr.mxu0 0.0
    %1442 = vmatpush1.msra.mxu0 0.0
    %1443 = vmatprep.subr.mxu0 0.0
    %1444 = vmatpush1.msra.mxu0 0.0
    %1445 = vmatprep.subr.mxu0 0.0
    %1446 = vmatpush1.msra.mxu0 0.0
    %1447 = vmatprep.subr.mxu0 0.0
    %1448 = vmatpush1.msra.mxu0 0.0
    %1449 = vmatprep.subr.mxu0 0.0
    %1450 = vmatpush1.msra.mxu0 0.0
    %1451 = vmatprep.subr.mxu0 0.0
    %1452 = vmatpush1.msra.mxu0 0.0
    %1453 = vmatprep.subr.mxu0 0.0
    %1454 = vmatpush1.msra.mxu0 0.0
    %1455 = vmatprep.subr.mxu0 0.0
    %1456 = vmatpush1.msra.mxu0 0.0
    %1457 = vmatprep.subr.mxu0 0.0
    %1458 = vmatpush1.msra.mxu0 0.0
    %1459 = vmatprep.subr.mxu0 0.0
    %1460 = vmatpush1.msra.mxu0 0.0
    %1461 = vmatprep.subr.mxu0 0.0
    %1462 = vmatpush1.msra.mxu0 0.0
    %1463 = vmatprep.subr.mxu0 0.0
    %1464 = vmatpush1.msra.mxu0 0.0
    %1465 = vmatprep.subr.mxu0 0.0
    %1466 = vmatpush1.msra.mxu0 0.0
    %1467 = vmatprep.subr.mxu0 0.0
    %1468 = vmatpush1.msra.mxu0 0.0
    %1469 = vmatprep.subr.mxu0 0.0
    %1470 = vmatpush1.msra.mxu0 0.0
    %1471 = vmatprep.subr.mxu0 0.0
    %1472 = vmatpush1.msra.mxu0 0.0
    %1473 = vmatprep.subr.mxu0 0.0
    %1474 = vmatpush1.msra.mxu0 0.0
    %1475 = vmatprep.subr.mxu0 0.0
    %1476 = vmatpush1.msra.mxu0 0.0
    %1477 = vmatprep.subr.mxu0 0.0
    %1478 = vmatpush1.msra.mxu0 0.0
    %1479 = vmatprep.subr.mxu0 0.0
    %1480 = vmatpush1.msra.mxu0 0.0
    %1481 = vmatprep.subr.mxu0 0.0
    %1482 = vmatpush1.msra.mxu0 0.0
    %1483 = vmatprep.subr.mxu0 0.0
    %1484 = vmatpush1.msra.mxu0 0.0
    %1485 = vmatprep.subr.mxu0 0.0
    %1486 = vmatpush1.msra.mxu0 0.0
    %1487 = vmatprep.subr.mxu0 0.0
    %1488 = vmatpush1.msra.mxu0 0.0
    %1489 = vmatprep.subr.mxu0 0.0
    %1490 = vmatpush1.msra.mxu0 0.0
    %1491 = vmatprep.mubr.f32.mxu0 0.0
    %1492 = vmatmul.mubr.f32.gmra.mrb[0].mxu0 %v1425
    %v1493 = vpop.f32.mrb[0].mxu0
    %v1494 = vadd.f32 0.0, %v1493
    %v1495 = vpop.f32.mrb[0].mxu0
    %1496 = vdwg.mxu0
    %1497 = vrot.lane.b32.xlu0 %v255, 104
    %v1498 = vpop.permute.xlu0 %1497
    %v1501 = vsel %vm261, %v1420, 0
    %1503 = vmatprep.subr.mxu0 0.0
    %1504 = vmatpush1.msra.mxu0 %v1498
    %1505 = vmatprep.subr.mxu0 0.0
    %1506 = vmatpush1.msra.mxu0 0.0
    %1507 = vmatprep.subr.mxu0 0.0
    %1508 = vmatpush1.msra.mxu0 0.0
    %1509 = vmatprep.subr.mxu0 0.0
    %1510 = vmatpush1.msra.mxu0 0.0
    %1511 = vmatprep.subr.mxu0 0.0
    %1512 = vmatpush1.msra.mxu0 0.0
    %1513 = vmatprep.subr.mxu0 0.0
    %1514 = vmatpush1.msra.mxu0 0.0
    %1515 = vmatprep.subr.mxu0 0.0
    %1516 = vmatpush1.msra.mxu0 0.0
    %1517 = vmatprep.subr.mxu0 0.0
    %1518 = vmatpush1.msra.mxu0 0.0
    %1519 = vmatprep.subr.mxu0 0.0
    %1520 = vmatpush1.msra.mxu0 0.0
    %1521 = vmatprep.subr.mxu0 0.0
    %1522 = vmatpush1.msra.mxu0 0.0
    %1523 = vmatprep.subr.mxu0 0.0
    %1524 = vmatpush1.msra.mxu0 0.0
    %1525 = vmatprep.subr.mxu0 0.0
    %1526 = vmatpush1.msra.mxu0 0.0
    %1527 = vmatprep.subr.mxu0 0.0
    %1528 = vmatpush1.msra.mxu0 0.0
    %1529 = vmatprep.subr.mxu0 0.0
    %1530 = vmatpush1.msra.mxu0 0.0
    %1531 = vmatprep.subr.mxu0 0.0
    %1532 = vmatpush1.msra.mxu0 0.0
    %1533 = vmatprep.subr.mxu0 0.0
    %1534 = vmatpush1.msra.mxu0 0.0
    %1535 = vmatprep.subr.mxu0 0.0
    %1536 = vmatpush1.msra.mxu0 0.0
    %1537 = vmatprep.subr.mxu0 0.0
    %1538 = vmatpush1.msra.mxu0 0.0
    %1539 = vmatprep.subr.mxu0 0.0
    %1540 = vmatpush1.msra.mxu0 0.0
    %1541 = vmatprep.subr.mxu0 0.0
    %1542 = vmatpush1.msra.mxu0 0.0
    %1543 = vmatprep.subr.mxu0 0.0
    %1544 = vmatpush1.msra.mxu0 0.0
    %1545 = vmatprep.subr.mxu0 0.0
    %1546 = vmatpush1.msra.mxu0 0.0
    %1547 = vmatprep.subr.mxu0 0.0
    %1548 = vmatpush1.msra.mxu0 0.0
    %1549 = vmatprep.subr.mxu0 0.0
    %1550 = vmatpush1.msra.mxu0 0.0
    %1551 = vmatprep.subr.mxu0 0.0
    %1552 = vmatpush1.msra.mxu0 0.0
    %1553 = vmatprep.subr.mxu0 0.0
    %1554 = vmatpush1.msra.mxu0 0.0
    %1555 = vmatprep.subr.mxu0 0.0
    %1556 = vmatpush1.msra.mxu0 0.0
    %1557 = vmatprep.subr.mxu0 0.0
    %1558 = vmatpush1.msra.mxu0 0.0
    %1559 = vmatprep.subr.mxu0 0.0
    %1560 = vmatpush1.msra.mxu0 0.0
    %1561 = vmatprep.subr.mxu0 0.0
    %1562 = vmatpush1.msra.mxu0 0.0
    %1563 = vmatprep.subr.mxu0 0.0
    %1564 = vmatpush1.msra.mxu0 0.0
    %1565 = vmatprep.subr.mxu0 0.0
    %1566 = vmatpush1.msra.mxu0 0.0
    %1567 = vmatprep.mubr.f32.mxu0 0.0
    %1568 = vmatmul.mubr.f32.gmra.mrb[0].mxu0 %v1501
    %v1569 = vpop.f32.mrb[0].mxu0
    %v1570 = vadd.f32 0.0, %v1569
    %v1571 = vpop.f32.mrb[0].mxu0
    %1572 = vdwg.mxu0
    %1575 = vrot.lane.b32.xlu0 %v833, 8
    %v1576 = vpop.permute.xlu0 %1575
    %1577 = vrot.lane.b32.xlu0 %v910, 8
    %v1578 = vpop.permute.xlu0 %1577
    %1583 = vrot.lane.b32.xlu0 %v1164, 16
    %v1584 = vpop.permute.xlu0 %1583
    %1585 = vrot.lane.b32.xlu0 %v1240, 16
    %v1586 = vpop.permute.xlu0 %1585
    %1591 = vrot.lane.b32.xlu0 %v1494, 24
    %v1592 = vpop.permute.xlu0 %1591
    %1593 = vrot.lane.b32.xlu0 %v1570, 24
    %v1594 = vpop.permute.xlu0 %1593
    %v1597 = vsel %vm261, %v505, %v1576
    %v1598 = vsel %vm261, %v578, %v1578
    %vm1599 = vcmask 130048
    %v1600 = vsel %vm1599, %v1597, %v1584
    %v1601 = vsel %vm1599, %v1598, %v1586
    %vm1602 = vcmask 195584
    %v1603 = vsel %vm1602, %v1600, %v1592
    %v1604 = vsel %vm1602, %v1601, %v1594
    %v1605 = vld [vmem:[%s4] sm:$0xff]
    %v1606 = vld [vmem:[%s4 + $0x8] sm:$0xff]
    %v1607 = vld [vmem:[%s4 + $0x10] sm:$0xff]
    %v1608 = vld [vmem:[%s4 + $0x18] sm:$0xff]
    %v1609 = vld [vmem:[%s7 + $0x1] sm:$0x1]
    %v1610 = vlaneseq
    %v1611 = vshrl.u32 %v1610, 7
    %v1612 = vsub.s32 0, %v1611
    %v1613 = vrot.slane %v1609, %v1612
    %1615 = vrot.lane.b32.xlu0 %v1613, 96
    %v1616 = vpop.permute.xlu0 %1615
    %v1619 = vsel %vm86, %v1603, 0
    %v1622 = vsel %vm86, %v1604, 0
    %1624 = vmatprep.subr.mxu0 0.0
    %1625 = vmatpush1.msra.mxu0 %v1605
    %1626 = vmatprep.subr.mxu0 0.0
    %1627 = vmatpush1.msra.mxu0 %v1606
    %1628 = vmatprep.subr.mxu0 0.0
    %1629 = vmatpush1.msra.mxu0 %v1607
    %1630 = vmatprep.subr.mxu0 0.0
    %1631 = vmatpush1.msra.mxu0 %v1608
    %1632 = vmatprep.subr.mxu0 0.0
    %1633 = vmatpush1.msra.mxu0 0.0
    %1634 = vmatprep.subr.mxu0 0.0
    %1635 = vmatpush1.msra.mxu0 0.0
    %1636 = vmatprep.subr.mxu0 0.0
    %1637 = vmatpush1.msra.mxu0 0.0
    %1638 = vmatprep.subr.mxu0 0.0
    %1639 = vmatpush1.msra.mxu0 0.0
    %1640 = vmatprep.subr.mxu0 0.0
    %1641 = vmatpush1.msra.mxu0 0.0
    %1642 = vmatprep.subr.mxu0 0.0
    %1643 = vmatpush1.msra.mxu0 0.0
    %1644 = vmatprep.subr.mxu0 0.0
    %1645 = vmatpush1.msra.mxu0 0.0
    %1646 = vmatprep.subr.mxu0 0.0
    %1647 = vmatpush1.msra.mxu0 0.0
    %1648 = vmatprep.subr.mxu0 0.0
    %1649 = vmatpush1.msra.mxu0 0.0
    %1650 = vmatprep.subr.mxu0 0.0
    %1651 = vmatpush1.msra.mxu0 0.0
    %1652 = vmatprep.subr.mxu0 0.0
    %1653 = vmatpush1.msra.mxu0 0.0
    %1654 = vmatprep.subr.mxu0 0.0
    %1655 = vmatpush1.msra.mxu0 0.0
    %1656 = vmatprep.subr.mxu0 0.0
    %1657 = vmatpush1.msra.mxu0 0.0
    %1658 = vmatprep.subr.mxu0 0.0
    %1659 = vmatpush1.msra.mxu0 0.0
    %1660 = vmatprep.subr.mxu0 0.0
    %1661 = vmatpush1.msra.mxu0 0.0
    %1662 = vmatprep.subr.mxu0 0.0
    %1663 = vmatpush1.msra.mxu0 0.0
    %1664 = vmatprep.subr.mxu0 0.0
    %1665 = vmatpush1.msra.mxu0 0.0
    %1666 = vmatprep.subr.mxu0 0.0
    %1667 = vmatpush1.msra.mxu0 0.0
    %1668 = vmatprep.subr.mxu0 0.0
    %1669 = vmatpush1.msra.mxu0 0.0
    %1670 = vmatprep.subr.mxu0 0.0
    %1671 = vmatpush1.msra.mxu0 0.0
    %1672 = vmatprep.subr.mxu0 0.0
    %1673 = vmatpush1.msra.mxu0 0.0
    %1674 = vmatprep.subr.mxu0 0.0
    %1675 = vmatpush1.msra.mxu0 0.0
    %1676 = vmatprep.subr.mxu0 0.0
    %1677 = vmatpush1.msra.mxu0 0.0
    %1678 = vmatprep.subr.mxu0 0.0
    %1679 = vmatpush1.msra.mxu0 0.0
    %1680 = vmatprep.subr.mxu0 0.0
    %1681 = vmatpush1.msra.mxu0 0.0
    %1682 = vmatprep.subr.mxu0 0.0
    %1683 = vmatpush1.msra.mxu0 0.0
    %1684 = vmatprep.subr.mxu0 0.0
    %1685 = vmatpush1.msra.mxu0 0.0
    %1686 = vmatprep.subr.mxu0 0.0
    %1687 = vmatpush1.msra.mxu0 0.0
    %1688 = vmatprep.mubr.f32.mxu0 0.0
    %1689 = vmatmul.mubr.f32.gmra.mrb[0].mxu0 %v1619
    %v1690 = vpop.f32.mrb[0].mxu0
    %v1691 = vadd.f32 %v1616, %v1690
    %v1692 = vpop.f32.mrb[0].mxu0
    %1693 = vmatprep.mubr.f32.mxu0 0.0
    %1694 = vmatmul.mubr.f32.gmra.mrb[0].mxu0 %v1622
    %v1695 = vpop.f32.mrb[0].mxu0
    %v1696 = vadd.f32 %v1616, %v1695
    %v1697 = vpop.f32.mrb[0].mxu0
    %1698 = vdwg.mxu0
    %v1699 = vadd.f32 %v71, %v1691
    %v1700 = vadd.f32 %v72, %v1696
    %v1701 = vsel %vm86, %v1699, 0.0
    %1702 = vadd.xlane.f32.xlu0 %v1701
    %v1703 = vpop.xlane.xlu0 %1702
    %v1704 = vsel %vm86, %v1700, 0.0
    %1705 = vadd.xlane.f32.xlu0 %v1704
    %v1706 = vpop.xlane.xlu0 %1705
    %v1707 = vrcp.pop 32.0
    %v1708 = vmul.f32 %v1703, %v1707
    %v1709 = vmul.f32 %v1706, %v1707
    %v1710 = vsub.f32 %v1699, %v1708
    %v1711 = vsub.f32 %v1700, %v1709
    %v1712 = vmul.f32 %v1710, %v1710
    %v1713 = vmul.f32 %v1711, %v1711
    %v1714 = vsel %vm86, %v1712, 0.0
    %1715 = vadd.xlane.f32.xlu0 %v1714
    %v1716 = vpop.xlane.xlu0 %1715
    %v1717 = vsel %vm86, %v1713, 0.0
    %1718 = vadd.xlane.f32.xlu0 %v1717
    %v1719 = vpop.xlane.xlu0 %1718
    %v1720 = vmul.f32 %v1716, %v1707
    %v1721 = vmul.f32 %v1719, %v1707
    %v1722 = vadd.f32 %v1720, 1e-05
    %v1723 = vadd.f32 %v1721, 1e-05
    %v1724 = vrsqrt.pop %v1722
    %v1725 = vrsqrt.pop %v1723
    %v1726 = vmul.f32 %v1710, %v1724
    %v1727 = vmul.f32 %v1711, %v1725
    %v1728 = vld [vmem:[%s7 + $0x4] sm:$0x1]
    %v1729 = vlaneseq
    %v1730 = vshrl.u32 %v1729, 7
    %v1731 = vsub.s32 0, %v1730
    %v1732 = vrot.slane %v1728, %v1731
    %v1733 = vmul.f32 %v1726, %v1732
    %v1734 = vmul.f32 %v1727, %v1732
    %1736 = vrot.lane.b32.xlu0 %v1732, 96
    %v1737 = vpop.permute.xlu0 %1736
    %v1739 = vadd.f32 %v1733, %v1737
    %v1740 = vadd.f32 %v1734, %v1737
    %v1741 = vld [vmem:[#allocation7] sm:$0xff]
    %v1742 = vld [vmem:[#allocation7 + $0x8] sm:$0xff]
    %v1743 = vld [vmem:[#allocation7 + $0x10] sm:$0xff]
    %v1744 = vld [vmem:[#allocation7 + $0x18] sm:$0xff]
    %v1745 = vld [vmem:[%s7 + $0x2] sm:$0x1]
    %v1746 = vlaneseq
    %v1747 = vshrl.u32 %v1746, 7
    %v1748 = vsub.s32 0, %v1747
    %v1749 = vrot.slane %v1745, %v1748
    %v1751 = vsel %vm86, %v1739, 0
    %v1754 = vsel %vm86, %v1740, 0
    %1756 = vmatprep.subr.mxu0 0.0
    %1757 = vmatpush1.msra.mxu0 %v1741
    %1758 = vmatprep.subr.mxu0 0.0
    %1759 = vmatpush1.msra.mxu0 %v1742
    %1760 = vmatprep.subr.mxu0 0.0
    %1761 = vmatpush1.msra.mxu0 %v1743
    %1762 = vmatprep.subr.mxu0 0.0
    %1763 = vmatpush1.msra.mxu0 %v1744
    %1764 = vmatprep.subr.mxu0 0.0
    %1765 = vmatpush1.msra.mxu0 0.0
    %1766 = vmatprep.subr.mxu0 0.0
    %1767 = vmatpush1.msra.mxu0 0.0
    %1768 = vmatprep.subr.mxu0 0.0
    %1769 = vmatpush1.msra.mxu0 0.0
    %1770 = vmatprep.subr.mxu0 0.0
    %1771 = vmatpush1.msra.mxu0 0.0
    %1772 = vmatprep.subr.mxu0 0.0
    %1773 = vmatpush1.msra.mxu0 0.0
    %1774 = vmatprep.subr.mxu0 0.0
    %1775 = vmatpush1.msra.mxu0 0.0
    %1776 = vmatprep.subr.mxu0 0.0
    %1777 = vmatpush1.msra.mxu0 0.0
    %1778 = vmatprep.subr.mxu0 0.0
    %1779 = vmatpush1.msra.mxu0 0.0
    %1780 = vmatprep.subr.mxu0 0.0
    %1781 = vmatpush1.msra.mxu0 0.0
    %1782 = vmatprep.subr.mxu0 0.0
    %1783 = vmatpush1.msra.mxu0 0.0
    %1784 = vmatprep.subr.mxu0 0.0
    %1785 = vmatpush1.msra.mxu0 0.0
    %1786 = vmatprep.subr.mxu0 0.0
    %1787 = vmatpush1.msra.mxu0 0.0
    %1788 = vmatprep.subr.mxu0 0.0
    %1789 = vmatpush1.msra.mxu0 0.0
    %1790 = vmatprep.subr.mxu0 0.0
    %1791 = vmatpush1.msra.mxu0 0.0
    %1792 = vmatprep.subr.mxu0 0.0
    %1793 = vmatpush1.msra.mxu0 0.0
    %1794 = vmatprep.subr.mxu0 0.0
    %1795 = vmatpush1.msra.mxu0 0.0
    %1796 = vmatprep.subr.mxu0 0.0
    %1797 = vmatpush1.msra.mxu0 0.0
    %1798 = vmatprep.subr.mxu0 0.0
    %1799 = vmatpush1.msra.mxu0 0.0
    %1800 = vmatprep.subr.mxu0 0.0
    %1801 = vmatpush1.msra.mxu0 0.0
    %1802 = vmatprep.subr.mxu0 0.0
    %1803 = vmatpush1.msra.mxu0 0.0
    %1804 = vmatprep.subr.mxu0 0.0
    %1805 = vmatpush1.msra.mxu0 0.0
    %1806 = vmatprep.subr.mxu0 0.0
    %1807 = vmatpush1.msra.mxu0 0.0
    %1808 = vmatprep.subr.mxu0 0.0
    %1809 = vmatpush1.msra.mxu0 0.0
    %1810 = vmatprep.subr.mxu0 0.0
    %1811 = vmatpush1.msra.mxu0 0.0
    %1812 = vmatprep.subr.mxu0 0.0
    %1813 = vmatpush1.msra.mxu0 0.0
    %1814 = vmatprep.subr.mxu0 0.0
    %1815 = vmatpush1.msra.mxu0 0.0
    %1816 = vmatprep.subr.mxu0 0.0
    %1817 = vmatpush1.msra.mxu0 0.0
    %1818 = vmatprep.subr.mxu0 0.0
    %1819 = vmatpush1.msra.mxu0 0.0
    %1820 = vmatprep.mubr.f32.mxu0 0.0
    %1821 = vmatmul.mubr.f32.gmra.mrb[0].mxu0 %v1751
    %v1822 = vpop.f32.mrb[0].mxu0
    %v1823 = vadd.f32 %v1749, %v1822
    %v1824 = vpop.f32.mrb[0].mxu0
    %1825 = vmatprep.mubr.f32.mxu0 0.0
    %1826 = vmatmul.mubr.f32.gmra.mrb[0].mxu0 %v1754
    %v1827 = vpop.f32.mrb[0].mxu0
    %v1828 = vadd.f32 %v1749, %v1827
    %v1829 = vpop.f32.mrb[0].mxu0
    %1830 = vdwg.mxu0
    %v1831 = vmax.f32 %v1823, 0.0
    %v1832 = vmax.f32 %v1828, 0.0
    %v1833 = vld [vmem:[%s6] sm:$0xff]
    %v1834 = vld [vmem:[%s6 + $0x8] sm:$0xff]
    %v1835 = vld [vmem:[%s6 + $0x10] sm:$0xff]
    %v1836 = vld [vmem:[%s6 + $0x18] sm:$0xff]
    %v1837 = vld [vmem:[%s6 + $0x20] sm:$0xff]
    %v1838 = vld [vmem:[%s6 + $0x28] sm:$0xff]
    %v1839 = vld [vmem:[%s6 + $0x30] sm:$0xff]
    %v1840 = vld [vmem:[%s6 + $0x38] sm:$0xff]
    %v1841 = vld [vmem:[%s7 + $0x3] sm:$0x1]
    %v1842 = vlaneseq
    %v1843 = vshrl.u32 %v1842, 7
    %v1844 = vsub.s32 0, %v1843
    %v1845 = vrot.slane %v1841, %v1844
    %vm1846 = vcmask 523264
    %v1848 = vsel %vm1846, %v1831, 0
    %v1851 = vsel %vm1846, %v1832, 0
    %1853 = vmatprep.subr.mxu0 0.0
    %1854 = vmatpush1.msra.mxu0 %v1833
    %1855 = vmatprep.subr.mxu0 0.0
    %1856 = vmatpush1.msra.mxu0 %v1834
    %1857 = vmatprep.subr.mxu0 0.0
    %1858 = vmatpush1.msra.mxu0 %v1835
    %1859 = vmatprep.subr.mxu0 0.0
    %1860 = vmatpush1.msra.mxu0 %v1836
    %1861 = vmatprep.subr.mxu0 0.0
    %1862 = vmatpush1.msra.mxu0 %v1837
    %1863 = vmatprep.subr.mxu0 0.0
    %1864 = vmatpush1.msra.mxu0 %v1838
    %1865 = vmatprep.subr.mxu0 0.0
    %1866 = vmatpush1.msra.mxu0 %v1839
    %1867 = vmatprep.subr.mxu0 0.0
    %1868 = vmatpush1.msra.mxu0 %v1840
    %1869 = vmatprep.subr.mxu0 0.0
    %1870 = vmatpush1.msra.mxu0 0.0
    %1871 = vmatprep.subr.mxu0 0.0
    %1872 = vmatpush1.msra.mxu0 0.0
    %1873 = vmatprep.subr.mxu0 0.0
    %1874 = vmatpush1.msra.mxu0 0.0
    %1875 = vmatprep.subr.mxu0 0.0
    %1876 = vmatpush1.msra.mxu0 0.0
    %1877 = vmatprep.subr.mxu0 0.0
    %1878 = vmatpush1.msra.mxu0 0.0
    %1879 = vmatprep.subr.mxu0 0.0
    %1880 = vmatpush1.msra.mxu0 0.0
    %1881 = vmatprep.subr.mxu0 0.0
    %1882 = vmatpush1.msra.mxu0 0.0
    %1883 = vmatprep.subr.mxu0 0.0
    %1884 = vmatpush1.msra.mxu0 0.0
    %1885 = vmatprep.subr.mxu0 0.0
    %1886 = vmatpush1.msra.mxu0 0.0
    %1887 = vmatprep.subr.mxu0 0.0
    %1888 = vmatpush1.msra.mxu0 0.0
    %1889 = vmatprep.subr.mxu0 0.0
    %1890 = vmatpush1.msra.mxu0 0.0
    %1891 = vmatprep.subr.mxu0 0.0
    %1892 = vmatpush1.msra.mxu0 0.0
    %1893 = vmatprep.subr.mxu0 0.0
    %1894 = vmatpush1.msra.mxu0 0.0
    %1895 = vmatprep.subr.mxu0 0.0
    %1896 = vmatpush1.msra.mxu0 0.0
    %1897 = vmatprep.subr.mxu0 0.0
    %1898 = vmatpush1.msra.mxu0 0.0
    %1899 = vmatprep.subr.mxu0 0.0
    %1900 = vmatpush1.msra.mxu0 0.0
    %1901 = vmatprep.subr.mxu0 0.0
    %1902 = vmatpush1.msra.mxu0 0.0
    %1903 = vmatprep.subr.mxu0 0.0
    %1904 = vmatpush1.msra.mxu0 0.0
    %1905 = vmatprep.subr.mxu0 0.0
    %1906 = vmatpush1.msra.mxu0 0.0
    %1907 = vmatprep.subr.mxu0 0.0
    %1908 = vmatpush1.msra.mxu0 0.0
    %1909 = vmatprep.subr.mxu0 0.0
    %1910 = vmatpush1.msra.mxu0 0.0
    %1911 = vmatprep.subr.mxu0 0.0
    %1912 = vmatpush1.msra.mxu0 0.0
    %1913 = vmatprep.subr.mxu0 0.0
    %1914 = vmatpush1.msra.mxu0 0.0
    %1915 = vmatprep.subr.mxu0 0.0
    %1916 = vmatpush1.msra.mxu0 0.0
    %1917 = vmatprep.mubr.f32.mxu0 0.0
    %1918 = vmatmul.mubr.f32.gmra.mrb[0].mxu0 %v1848
    %v1919 = vpop.f32.mrb[0].mxu0
    %v1920 = vadd.f32 %v1845, %v1919
    %v1921 = vpop.f32.mrb[0].mxu0
    %1922 = vmatprep.mubr.f32.mxu0 0.0
    %1923 = vmatmul.mubr.f32.gmra.mrb[0].mxu0 %v1851
    %v1924 = vpop.f32.mrb[0].mxu0
    %v1925 = vadd.f32 %v1845, %v1924
    %v1926 = vpop.f32.mrb[0].mxu0
    %1927 = vdwg.mxu0
    %v1928 = vadd.f32 %v1739, %v1920
    %v1929 = vadd.f32 %v1740, %v1925
    %v1930 = vsel %vm86, %v1928, 0.0
    %1931 = vadd.xlane.f32.xlu0 %v1930
    %v1932 = vpop.xlane.xlu0 %1931
    %v1933 = vsel %vm86, %v1929, 0.0
    %1934 = vadd.xlane.f32.xlu0 %v1933
    %v1935 = vpop.xlane.xlu0 %1934
    %v1936 = vmul.f32 %v1932, %v1707
    %v1937 = vmul.f32 %v1935, %v1707
    %v1938 = vsub.f32 %v1928, %v1936
    %v1939 = vsub.f32 %v1929, %v1937
    %v1940 = vmul.f32 %v1938, %v1938
    %v1941 = vmul.f32 %v1939, %v1939
    %v1942 = vsel %vm86, %v1940, 0.0
    %1943 = vadd.xlane.f32.xlu0 %v1942
    %v1944 = vpop.xlane.xlu0 %1943
    %v1945 = vsel %vm86, %v1941, 0.0
    %1946 = vadd.xlane.f32.xlu0 %v1945
    %v1947 = vpop.xlane.xlu0 %1946
    %v1948 = vmul.f32 %v1944, %v1707
    %v1949 = vmul.f32 %v1947, %v1707
    %v1950 = vadd.f32 %v1948, 1e-05
    %v1951 = vadd.f32 %v1949, 1e-05
    %v1952 = vrsqrt.pop %v1950
    %v1953 = vrsqrt.pop %v1951
    %v1954 = vmul.f32 %v1938, %v1952
    %v1955 = vmul.f32 %v1939, %v1953
    %v1956 = vld [vmem:[%s7 + $0x5] sm:$0x1]
    %v1957 = vlaneseq
    %v1958 = vshrl.u32 %v1957, 7
    %v1959 = vsub.s32 0, %v1958
    %v1960 = vrot.slane %v1956, %v1959
    %v1961 = vmul.f32 %v1954, %v1960
    %v1962 = vmul.f32 %v1955, %v1960
    %1964 = vrot.lane.b32.xlu0 %v1960, 96
    %v1965 = vpop.permute.xlu0 %1964
    %v1967 = vadd.f32 %v1961, %v1965
    %v1968 = vadd.f32 %v1962, %v1965
    %1969 = vst.msk [vmem:[#allocation8] sm:$0xff] %vm86, %v1967
    %1970 = vst.msk [vmem:[#allocation8 + $0x8] sm:$0xff] %vm86, %v1968
    // Predicated region
    $region46: #{tpu_custom_call.1} parent=1 // pred_check
      _
    $region47: #{tpu_custom_call.1} parent=1 // pred_check_branch
      %1972 = sbr.rel (0) target = $region49
    $region48: #{tpu_custom_call.1} parent=1 // pred_region
      %s1974 = ssub.s32 256, 256
      %1975 = vsyncadd [#allocation4], %s1974
      %s1976 = sshll.u32 [#allocation8], 4
      %s1977 = int_to_ptr.vmem [resolvable:$true] %s1976
      %1982 = dma.vmem_to_hbm [thread:$0]  %s1977, 256, %s8, [#allocation4], 128, 128, 8
    $region49: #{tpu_custom_call.1} parent=1 // pred_fallthru
      _
    // Predicated region
    $region50: #{tpu_custom_call.1} parent=1 // pred_check
      _
    $region51: #{tpu_custom_call.1} parent=1 // pred_check_branch
      %1984 = sbr.rel (0) target = $region53
    $region52: #{tpu_custom_call.1} parent=1 // pred_region
      %1985 = dma.done [#allocation4], 256
    $region53: #{tpu_custom_call.1} parent=1 // pred_fallthru
      _
    %1986 = vsyncpa [#allocation3], 1
    %1987 = vsyncpa [#allocation6], 1
    %1988 = vsyncpa [#allocation4], 1

</llo_original>
